<compile_context>
chip_gen: v5e
topology: v5e:2x2
jax: 0.10.0
libtpu: 0.0.40
codegen_flags: <defaults>
</compile_context>

<pallas_src>
import functools

import jax
import jax.numpy as jnp
from jax.experimental import pallas as pl
from jax.experimental.pallas import tpu as pltpu

B = 8          # batch (small; raise to >=128 to amortize the weight stream)
D_IN = 9216    # fc1 in_features
H = 128        # fc1 out_features
C = 10         # fc2 out_features (classes)


def _pick_num_k_steps():
    """1 K-step on v6e/v7x (fast HBM), 2 on v5e/older (keeps DMA overlap)."""
    try:
        kind = jax.devices()[0].device_kind.lower()
    except Exception:
        return 2
    if "v6" in kind or "v7" in kind:
        return 1
    return 2


def net_shared_kernel(x_ref, w1_ref, b1_ref, w2_ref, b2_ref, o_ref, acc_ref):
    k = pl.program_id(0)

    @pl.when(k == 0)
    def _init():
        acc_ref[...] = jnp.zeros_like(acc_ref)

    # fc1 partial product for this K-tile: bf16 operands, f32 MXU accumulation.
    acc_ref[...] += jnp.dot(
        x_ref[...], w1_ref[...], preferred_element_type=jnp.float32
    )

    @pl.when(k == pl.num_programs(0) - 1)
    def _finalize():
        # bias + ReLU
        h = jnp.maximum(acc_ref[...] + b1_ref[...], 0.0)            # (B, H) f32
        # fc2 (tiny: 128x10, kept in f32)
        logits = jnp.dot(
            h, w2_ref[...], preferred_element_type=jnp.float32
        ) + b2_ref[...]                                             # (B, C)
        # numerically-stable log_softmax along the class axis (dim=1)
        m = jnp.max(logits, axis=-1, keepdims=True)
        shifted = logits - m
        lse = jnp.log(jnp.sum(jnp.exp(shifted), axis=-1, keepdims=True))
        o_ref[...] = (shifted - lse).astype(o_ref.dtype)


@functools.partial(jax.jit, static_argnames=("num_k_steps",))
def net_shared_forward(x_bf, w1_bf, b1_2d, w2_f32, b2_2d, *, num_k_steps):
    """x_bf: (B, 9216) bf16 -> log-probs (B, 10) f32.

    All operands must already be in their streaming dtypes (see pack_params);
    the pallas_call is the only op in the hot path.
    """
    batch = x_bf.shape[0]
    assert D_IN % num_k_steps == 0
    tk = D_IN // num_k_steps

    return pl.pallas_call(
        net_shared_kernel,
        out_shape=jax.ShapeDtypeStruct((batch, C), jnp.float32),
        grid_spec=pltpu.PrefetchScalarGridSpec(
            num_scalar_prefetch=0,
            grid=(num_k_steps,),
            in_specs=[
                pl.BlockSpec((batch, tk), lambda k: (0, k)),   # x   (bf16)
                pl.BlockSpec((tk, H), lambda k: (k, 0)),       # w1  (bf16)
                pl.BlockSpec((1, H), lambda k: (0, 0)),        # b1  (f32)
                pl.BlockSpec((H, C), lambda k: (0, 0)),        # w2  (f32)
                pl.BlockSpec((1, C), lambda k: (0, 0)),        # b2  (f32)
            ],
            out_specs=pl.BlockSpec((batch, C), lambda k: (0, 0)),
            scratch_shapes=[pltpu.VMEM((batch, H), jnp.float32)],
        ),
        compiler_params=pltpu.CompilerParams(
            # K is a sequential reduction axis feeding the VMEM accumulator;
            # must stay "arbitrary".  (For B>=16 on v7x, add a leading
            # "parallel" batch axis so both TensorCores share the work.)
            dimension_semantics=("arbitrary",),
        ),
    )(x_bf, w1_bf, b1_2d, w2_f32, b2_2d)


def init_params(key):
    """Deterministic init mimicking nn.Linear default (U(-1/sqrt(fan_in), .))."""
    k1, k2, k3, k4 = jax.random.split(key, 4)
    bound1 = 1.0 / jnp.sqrt(jnp.float32(D_IN))
    bound2 = 1.0 / jnp.sqrt(jnp.float32(H))
    # Stored transposed relative to PyTorch's (out, in) convention.
    w1_t = jax.random.uniform(k1, (D_IN, H), jnp.float32, -bound1, bound1)
    b1 = jax.random.uniform(k2, (H,), jnp.float32, -bound1, bound1)
    w2_t = jax.random.uniform(k3, (H, C), jnp.float32, -bound2, bound2)
    b2 = jax.random.uniform(k4, (C,), jnp.float32, -bound2, bound2)
    return w1_t, b1, w2_t, b2


def pack_params(w1_t, b1, w2_t, b2):
    """One-time dtype/shape packing so the per-call path has zero casts.

    fc1 operands are streamed in bf16 (f32 accumulation on the MXU); expect
    ~1e-3 relative deviation vs a pure-f32 PyTorch forward.
    """
    w1_bf = w1_t.astype(jnp.bfloat16)
    b1_2d = b1.reshape(1, H).astype(jnp.float32)
    w2_f32 = w2_t.astype(jnp.float32)
    b2_2d = b2.reshape(1, C).astype(jnp.float32)
    return w1_bf, b1_2d, w2_f32, b2_2d


if __name__ == "__main__":
    key = jax.random.PRNGKey(0)
    kx, kp = jax.random.split(key)
    x = jax.random.normal(kx, (B, D_IN), jnp.float32)
    w1_t, b1, w2_t, b2 = init_params(kp)

    # One-time packing (not in the per-call hot path).
    w1_bf, b1_2d, w2_f32, b2_2d = pack_params(w1_t, b1, w2_t, b2)
    x_bf = x.astype(jnp.bfloat16)
    w1_bf, b1_2d, w2_f32, b2_2d, x_bf = jax.block_until_ready(
        (w1_bf, b1_2d, w2_f32, b2_2d, x_bf)
    )

    num_k_steps = _pick_num_k_steps()
    out = net_shared_forward(
        x_bf, w1_bf, b1_2d, w2_f32, b2_2d, num_k_steps=num_k_steps
    )
    out = jax.block_until_ready(out)

    # Reference computed with the same bf16-rounded fc1 operands (the kernel
    # intentionally streams x/w1 in bf16 with f32 accumulation).
    x_r = x_bf.astype(jnp.float32)
    w1_r = w1_bf.astype(jnp.float32)
    h_ref = jnp.maximum(x_r @ w1_r + b1, 0.0)
    logits_ref = h_ref @ w2_t + b2
    ref = jax.nn.log_softmax(logits_ref, axis=1)

    assert out.shape == (B, C)
    assert jnp.allclose(out, ref, atol=1e-3, rtol=1e-3), (
        jnp.max(jnp.abs(out - ref))
    )

    print("KERNEL_OK")
</pallas_src>

<mosaic_0001>
module attributes {stable_mosaic.version = 11 : i64} {
  func.func @net_shared_kernel(%arg0: i32, %arg1: memref<8x4608xbf16, #tpu.memory_space<vmem>>, %arg2: memref<4608x128xbf16, #tpu.memory_space<vmem>>, %arg3: memref<1x128xf32, #tpu.memory_space<vmem>>, %arg4: memref<128x10xf32, #tpu.memory_space<vmem>>, %arg5: memref<1x10xf32, #tpu.memory_space<vmem>>, %arg6: memref<8x10xf32, #tpu.memory_space<vmem>>, %arg7: memref<8x128xf32, #tpu.memory_space<vmem>>) attributes {dimension_semantics = [#tpu.dimension_semantics<arbitrary>], iteration_bounds = array<i64: 2>, scalar_prefetch = 0 : i64, scratch_operands = 1 : i64, tpu.core_type = #tpu.core_type<tc>, window_params = [{transform_indices = @transform_0, window_bounds = array<i64: 8, 4608>}, {transform_indices = @transform_1, window_bounds = array<i64: 4608, 128>}, {pipeline_mode = #tpu.pipeline_mode<synchronous>, transform_indices = @transform_2, window_bounds = array<i64: 1, 128>}, {pipeline_mode = #tpu.pipeline_mode<synchronous>, transform_indices = @transform_3, window_bounds = array<i64: 128, 10>}, {pipeline_mode = #tpu.pipeline_mode<synchronous>, transform_indices = @transform_4, window_bounds = array<i64: 1, 10>}, {pipeline_mode = #tpu.pipeline_mode<synchronous>, transform_indices = @transform_5, window_bounds = array<i64: 8, 10>}]} {
    %c0_i32 = arith.constant 0 : i32
    %0 = arith.cmpi eq, %arg0, %c0_i32 : i32
    %1 = arith.extui %0 : i1 to i32
    %c0_i32_0 = arith.constant 0 : i32
    %2 = arith.cmpi ne, %1, %c0_i32_0 : i32
    scf.if %2 {
      %cst_9 = arith.constant 0.000000e+00 : f32
      %12 = vector.broadcast %cst_9 : f32 to vector<8x128xf32>
      %c0_10 = arith.constant 0 : index
      %c0_11 = arith.constant 0 : index
      %13 = vector.load %arg7[%c0_10, %c0_11] : memref<8x128xf32, #tpu.memory_space<vmem>>, vector<8x128xf32>
      tpu.vector_store %arg7[%c0_10, %c0_11], %12 {strides = array<i32>} : memref<8x128xf32, #tpu.memory_space<vmem>>, vector<8x128xf32>,
    } else {
    }
    %c0 = arith.constant 0 : index
    %c0_1 = arith.constant 0 : index
    %3 = vector.load %arg7[%c0, %c0_1] : memref<8x128xf32, #tpu.memory_space<vmem>>, vector<8x128xf32>
    %c0_2 = arith.constant 0 : index
    %c0_3 = arith.constant 0 : index
    %4 = vector.load %arg1[%c0_2, %c0_3] : memref<8x4608xbf16, #tpu.memory_space<vmem>>, vector<8x4608xbf16>
    %c0_4 = arith.constant 0 : index
    %c0_5 = arith.constant 0 : index
    %5 = vector.load %arg2[%c0_4, %c0_5] : memref<4608x128xbf16, #tpu.memory_space<vmem>>, vector<4608x128xbf16>
    %cst = arith.constant dense<0.000000e+00> : vector<8x128xf32>
    %6 = tpu.matmul %4, %5, %cst {dimension_numbers = #tpu.dot_dimension_numbers<[1], [0], [0], [1], [0, 0, 1, 1], [], []>} : vector<8x4608xbf16>, vector<4608x128xbf16>, vector<8x128xf32> -> vector<8x128xf32>
    %7 = arith.addf %3, %6 : vector<8x128xf32>
    %c0_6 = arith.constant 0 : index
    %c0_7 = arith.constant 0 : index
    %8 = vector.load %arg7[%c0_6, %c0_7] : memref<8x128xf32, #tpu.memory_space<vmem>>, vector<8x128xf32>
    tpu.vector_store %arg7[%c0_6, %c0_7], %7 {strides = array<i32>} : memref<8x128xf32, #tpu.memory_space<vmem>>, vector<8x128xf32>,
    %c1_i32 = arith.constant 1 : i32
    %9 = arith.cmpi eq, %arg0, %c1_i32 : i32
    %10 = arith.extui %9 : i1 to i32
    %c0_i32_8 = arith.constant 0 : i32
    %11 = arith.cmpi ne, %10, %c0_i32_8 : i32
    scf.if %11 {
      %c0_9 = arith.constant 0 : index
      %c0_10 = arith.constant 0 : index
      %12 = vector.load %arg7[%c0_9, %c0_10] : memref<8x128xf32, #tpu.memory_space<vmem>>, vector<8x128xf32>
      %c0_11 = arith.constant 0 : index
      %c0_12 = arith.constant 0 : index
      %13 = vector.load %arg3[%c0_11, %c0_12] : memref<1x128xf32, #tpu.memory_space<vmem>>, vector<1x128xf32>
      %14 = vector.broadcast %13 : vector<1x128xf32> to vector<8x128xf32>
      %15 = arith.addf %12, %14 : vector<8x128xf32>
      %cst_13 = arith.constant 0.000000e+00 : f32
      %16 = vector.broadcast %cst_13 : f32 to vector<8x128xf32>
      %17 = arith.maximumf %15, %16 : vector<8x128xf32>
      %c0_14 = arith.constant 0 : index
      %c0_15 = arith.constant 0 : index
      %18 = vector.load %arg4[%c0_14, %c0_15] : memref<128x10xf32, #tpu.memory_space<vmem>>, vector<128x10xf32>
      %cst_16 = arith.constant dense<0.000000e+00> : vector<8x10xf32>
      %19 = tpu.matmul %17, %18, %cst_16 {dimension_numbers = #tpu.dot_dimension_numbers<[1], [0], [0], [1], [0, 0, 1, 1], [], []>} : vector<8x128xf32>, vector<128x10xf32>, vector<8x10xf32> -> vector<8x10xf32>
      %c0_17 = arith.constant 0 : index
      %c0_18 = arith.constant 0 : index
      %20 = vector.load %arg5[%c0_17, %c0_18] : memref<1x10xf32, #tpu.memory_space<vmem>>, vector<1x10xf32>
      %21 = vector.broadcast %20 : vector<1x10xf32> to vector<8x10xf32>
      %22 = arith.addf %19, %21 : vector<8x10xf32>
      %cst_19 = arith.constant dense<0xFF800000> : vector<8xf32>
      %23 = vector.multi_reduction <maximumf>, %22, %cst_19 [1] : vector<8x10xf32> to vector<8xf32>
      %24 = vector.shape_cast %23 : vector<8xf32> to vector<8x1xf32>
      %25 = vector.broadcast %24 : vector<8x1xf32> to vector<8x10xf32>
      %26 = arith.subf %22, %25 : vector<8x10xf32>
      %27 = math.exp %26 : vector<8x10xf32>
      %cst_20 = arith.constant dense<0.000000e+00> : vector<8xf32>
      %28 = vector.multi_reduction <add>, %27, %cst_20 [1] : vector<8x10xf32> to vector<8xf32>
      %29 = vector.shape_cast %28 : vector<8xf32> to vector<8x1xf32>
      %30 = math.log %29 : vector<8x1xf32>
      %31 = vector.broadcast %30 : vector<8x1xf32> to vector<8x10xf32>
      %32 = arith.subf %26, %31 : vector<8x10xf32>
      %c0_21 = arith.constant 0 : index
      %c0_22 = arith.constant 0 : index
      %33 = vector.load %arg6[%c0_21, %c0_22] : memref<8x10xf32, #tpu.memory_space<vmem>>, vector<8x10xf32>
      tpu.vector_store %arg6[%c0_21, %c0_22], %32 {strides = array<i32>} : memref<8x10xf32, #tpu.memory_space<vmem>>, vector<8x10xf32>,
    } else {
    }
    return
  }
  func.func @transform_0(%arg0: i32) -> (i32, i32) {
    %c0_i32 = arith.constant 0 : i32
    %c0_i32_0 = arith.constant 0 : i32
    return %c0_i32, %arg0 : i32, i32
  }
  func.func @transform_1(%arg0: i32) -> (i32, i32) {
    %c0_i32 = arith.constant 0 : i32
    %c0_i32_0 = arith.constant 0 : i32
    return %arg0, %c0_i32 : i32, i32
  }
  func.func @transform_2(%arg0: i32) -> (i32, i32) {
    %c0_i32 = arith.constant 0 : i32
    %c0_i32_0 = arith.constant 0 : i32
    %c0_i32_1 = arith.constant 0 : i32
    return %c0_i32, %c0_i32_0 : i32, i32
  }
  func.func @transform_3(%arg0: i32) -> (i32, i32) {
    %c0_i32 = arith.constant 0 : i32
    %c0_i32_0 = arith.constant 0 : i32
    %c0_i32_1 = arith.constant 0 : i32
    return %c0_i32, %c0_i32_0 : i32, i32
  }
  func.func @transform_4(%arg0: i32) -> (i32, i32) {
    %c0_i32 = arith.constant 0 : i32
    %c0_i32_0 = arith.constant 0 : i32
    %c0_i32_1 = arith.constant 0 : i32
    return %c0_i32, %c0_i32_0 : i32, i32
  }
  func.func @transform_5(%arg0: i32) -> (i32, i32) {
    %c0_i32 = arith.constant 0 : i32
    %c0_i32_0 = arith.constant 0 : i32
    %c0_i32_1 = arith.constant 0 : i32
    return %c0_i32, %c0_i32_0 : i32, i32
  }
}

</mosaic_0001>

<llo_original>
// kernel: net_shared_forward.1
$region0: #{net_shared_forward.1}
  #allocation0 [shape = 'u32[]', space=smem, size = 0x4, offset = 0x4, fixed_abs, tag = 'smem constant byte address 0x4 - core index']
  #allocation1 [shape = 'u32[72,128]{1,0:T(1,128)}', space=vmem, size = 0x9000, scoped, tag = 'internal scratch']
  #allocation2 [shape = 'f32[8,128]{1,0:T(8,128)}', space=vmem, size = 0x1000, scoped, tag = 'scratch operand']
  %s0 = inlined_call_operand.hbm [shape: bf16[8,9216], index: 0, kind: input, shape index: {}]
  %s1 = inlined_call_operand.hbm [shape: bf16[9216,128], index: 1, kind: input, shape index: {}]
  %s2 = inlined_call_operand.hbm [shape: f32[1,128], index: 2, kind: input, shape index: {}]
  %s3 = inlined_call_operand.vmem [shape: f32[128,10], index: 3, kind: input, shape index: {}]
  %s4 = inlined_call_operand.hbm [shape: f32[1,10], index: 4, kind: input, shape index: {}]
  %s5 = inlined_call_operand.hbm [shape: f32[8,10], index: 5, kind: output, shape index: {}]
  %s6 = sld [smem:[#allocation0]]
  $region77: #{net_shared_forward.1} parent=0
    _
  %s8 = ssub.s32 1, %s6
  %s9 = scalar_select 0, %s8, %s6
  $region1: #{net_shared_forward.1} parent=0
    #allocation3 [shape = 'u8[147456]{0}', space=vmem, size = 0x24000, scoped, tag = 'input window, operand 0']
    #allocation4 [shape = 's32[2]{0}', space=sflag, size = 0x8, scoped, tag = 'scoped memory for net_shared_forward.1']
    #allocation5 [shape = 's32[2]{0}', space=sflag, size = 0x8, scoped, tag = 'scoped memory for net_shared_forward.1']
    #allocation6 [shape = 'u8[2359296]{0}', space=vmem, size = 0x240000, scoped, tag = 'input window, operand 1']
    #allocation7 [shape = 's32[2]{0}', space=sflag, size = 0x8, scoped, tag = 'scoped memory for net_shared_forward.1']
    #allocation8 [shape = 'u8[512]{0}', space=vmem, size = 0x400, scoped, tag = 'input window, operand 2, single buffered']
    #allocation9 [shape = 'u8[512]{0}', space=vmem, size = 0x400, scoped, tag = 'input window, operand 4, single buffered']
    #allocation10 [shape = 's32[1]{0}', space=sflag, size = 0x4, scoped, tag = 'scoped memory for net_shared_forward.1']
    #allocation11 [shape = 'u8[4096]{0}', space=vmem, size = 0x1000, scoped, tag = 'output window, operand 0, single buffered']
    %10 = vsyncpa [#allocation4], 0
    %s11 = scalar_lea.sflag [#allocation4], 1
    %12 = vsyncpa %s11, 0
    %13 = vsyncpa [#allocation7], 0
    %s14 = scalar_lea.sflag [#allocation7], 1
    %15 = vsyncpa %s14, 0
    %16 = vsyncpa [#allocation10], 0
    %17 = vsyncpa [#allocation5], 0
    loop: start=0, step=1, limit=4
    $region2: #{net_shared_forward.1} parent=1 // loop_pre_header
      _
    $region3: #{net_shared_forward.1} parent=1 // loop_header
      %s19 = sphi 0, %s23
      %p20 = scmp.ge.s32.totalorder %s19, 4
      %s29 = sphi 0, %s31
      %s32 = sphi 0, %s29
      %s33 = sphi 0, %s32
      %s49 = sphi 0, %s33
      %s55 = sphi 0, %s57
      %s58 = sphi 0, %s55
      %s59 = sphi 0, %s58
      %s75 = sphi 0, %s59
      %s79 = sphi 0, %s79
      %s81 = sphi 0, %s79
      %s82 = sphi 0, %s81
      %s96 = sphi 0, %s82
      %s100 = sphi 0, %s100
      %s102 = sphi 0, %s100
      %s103 = sphi 0, %s102
      %s117 = sphi 0, %s103
      %s121 = sphi 0, %s121
      %s123 = sphi 0, %s121
      %s124 = sphi 0, %s123
      %s138 = sphi 0, %s124
      %s142 = sphi 0, %s142
      %s144 = sphi 0, %s142
      %s145 = sphi 0, %s144
      %s159 = sphi 0, %s145
    $region4: #{net_shared_forward.1} parent=1 // loop_header_branch
      %22 = sbr.rel (%p20) target = $region8
    $region5: #{net_shared_forward.1} parent=1 // loop_body
      %s24 = ssub.s32 %s19, 1
      %s25 = ssub.s32 %s19, 2
      %s26 = sadd.s32 %s19, 1
      %s27 = ssub.s32 %s19, %s26
      %p28 = scmp.eq.s32.totalorder %s27, 0
      %s30 = sadd.s32 %s29, 1
      %s31 = scalar_select %p28, %s29, %s30
      %p34 = pneg %p28
      %p35 = scmp.eq.s32.totalorder %s19, 1
      %p36 = por %p34, %p35
      %p37 = scmp.ne.s32.totalorder %s29, %s32
      %p38 = scmp.eq.s32.totalorder %s19, 0
      %p39 = por %p37, %p38
      %p40 = scmp.ne.s32.totalorder %s29, %s32
      %p41 = scmp.eq.s32.totalorder %s24, 1
      %p42 = por %p40, %p41
      %p43 = scmp.ne.s32.totalorder %s32, %s33
      %p44 = scmp.eq.s32.totalorder %s24, 0
      %p45 = por %p43, %p44
      %p46 = scmp.ne.s32.totalorder %s32, %s33
      %p47 = scmp.eq.s32.totalorder %s25, 1
      %p48 = por %p46, %p47
      %p50 = scmp.ne.s32.totalorder %s33, %s49
      %p51 = scmp.eq.s32.totalorder %s25, 0
      %p52 = por %p50, %p51
      %s53 = ssub.s32 %s19, %s26
      %p54 = scmp.eq.s32.totalorder %s53, 0
      %s56 = sadd.s32 %s55, 1
      %s57 = scalar_select %p54, %s55, %s56
      %p60 = pneg %p54
      %p61 = scmp.eq.s32.totalorder %s19, 1
      %p62 = por %p60, %p61
      %p63 = scmp.ne.s32.totalorder %s55, %s58
      %p64 = scmp.eq.s32.totalorder %s19, 0
      %p65 = por %p63, %p64
      %p66 = scmp.ne.s32.totalorder %s55, %s58
      %p67 = scmp.eq.s32.totalorder %s24, 1
      %p68 = por %p66, %p67
      %p69 = scmp.ne.s32.totalorder %s58, %s59
      %p70 = scmp.eq.s32.totalorder %s24, 0
      %p71 = por %p69, %p70
      %p72 = scmp.ne.s32.totalorder %s58, %s59
      %p73 = scmp.eq.s32.totalorder %s25, 1
      %p74 = por %p72, %p73
      %p76 = scmp.ne.s32.totalorder %s59, %s75
      %p77 = scmp.eq.s32.totalorder %s25, 0
      %p78 = por %p76, %p77
      %s80 = sadd.s32 %s79, 1
      %p83 = scmp.eq.s32.totalorder %s19, 1
      %p84 = scmp.ne.s32.totalorder %s79, %s81
      %p85 = scmp.eq.s32.totalorder %s19, 0
      %p86 = por %p84, %p85
      %p87 = scmp.ne.s32.totalorder %s79, %s81
      %p88 = scmp.eq.s32.totalorder %s24, 1
      %p89 = por %p87, %p88
      %p90 = scmp.ne.s32.totalorder %s81, %s82
      %p91 = scmp.eq.s32.totalorder %s24, 0
      %p92 = por %p90, %p91
      %p93 = scmp.ne.s32.totalorder %s81, %s82
      %p94 = scmp.eq.s32.totalorder %s25, 1
      %p95 = por %p93, %p94
      %p97 = scmp.ne.s32.totalorder %s82, %s96
      %p98 = scmp.eq.s32.totalorder %s25, 0
      %p99 = por %p97, %p98
      %s101 = sadd.s32 %s100, 1
      %p104 = scmp.eq.s32.totalorder %s19, 1
      %p105 = scmp.ne.s32.totalorder %s100, %s102
      %p106 = scmp.eq.s32.totalorder %s19, 0
      %p107 = por %p105, %p106
      %p108 = scmp.ne.s32.totalorder %s100, %s102
      %p109 = scmp.eq.s32.totalorder %s24, 1
      %p110 = por %p108, %p109
      %p111 = scmp.ne.s32.totalorder %s102, %s103
      %p112 = scmp.eq.s32.totalorder %s24, 0
      %p113 = por %p111, %p112
      %p114 = scmp.ne.s32.totalorder %s102, %s103
      %p115 = scmp.eq.s32.totalorder %s25, 1
      %p116 = por %p114, %p115
      %p118 = scmp.ne.s32.totalorder %s103, %s117
      %p119 = scmp.eq.s32.totalorder %s25, 0
      %p120 = por %p118, %p119
      %s122 = sadd.s32 %s121, 1
      %p125 = scmp.eq.s32.totalorder %s19, 1
      %p126 = scmp.ne.s32.totalorder %s121, %s123
      %p127 = scmp.eq.s32.totalorder %s19, 0
      %p128 = por %p126, %p127
      %p129 = scmp.ne.s32.totalorder %s121, %s123
      %p130 = scmp.eq.s32.totalorder %s24, 1
      %p131 = por %p129, %p130
      %p132 = scmp.ne.s32.totalorder %s123, %s124
      %p133 = scmp.eq.s32.totalorder %s24, 0
      %p134 = por %p132, %p133
      %p135 = scmp.ne.s32.totalorder %s123, %s124
      %p136 = scmp.eq.s32.totalorder %s25, 1
      %p137 = por %p135, %p136
      %p139 = scmp.ne.s32.totalorder %s124, %s138
      %p140 = scmp.eq.s32.totalorder %s25, 0
      %p141 = por %p139, %p140
      %s143 = sadd.s32 %s142, 1
      %p146 = scmp.eq.s32.totalorder %s19, 1
      %p147 = scmp.ne.s32.totalorder %s142, %s144
      %p148 = scmp.eq.s32.totalorder %s19, 0
      %p149 = por %p147, %p148
      %p150 = scmp.ne.s32.totalorder %s142, %s144
      %p151 = scmp.eq.s32.totalorder %s24, 1
      %p152 = por %p150, %p151
      %p153 = scmp.ne.s32.totalorder %s144, %s145
      %p154 = scmp.eq.s32.totalorder %s24, 0
      %p155 = por %p153, %p154
      %p156 = scmp.ne.s32.totalorder %s144, %s145
      %p157 = scmp.eq.s32.totalorder %s25, 1
      %p158 = por %p156, %p157
      %p160 = scmp.ne.s32.totalorder %s145, %s159
      %p161 = scmp.eq.s32.totalorder %s25, 0
      %p162 = por %p160, %p161
      %p163 = scmp.le.s32.totalorder 1, %s19
      %p164 = scmp.lt.s32.totalorder %s19, 3
      %p165 = pnand %p163, %p164
      %p166 = pneg %p165
      // Predicated region
      $region9: #{net_shared_forward.1} parent=5 // pred_check
        _
      $region10: #{net_shared_forward.1} parent=5 // pred_check_branch
        %168 = sbr.rel (%p165) target = $region12
      $region11: #{net_shared_forward.1} parent=5 // pred_region
        %s169 = ssub.s32 %s19, 1
        // Predicated region
        $region13: #{net_shared_forward.1} parent=11 // pred_check
          %p170 = pneg %p92
        $region14: #{net_shared_forward.1} parent=11 // pred_check_branch
          %172 = sbr.rel (%p170) target = $region16
        $region15: #{net_shared_forward.1} parent=11 // pred_region
          %174 = vsyncadd [#allocation7], 0
          %s176 = sshll.u32 %s2, 4
          %s177 = int_to_ptr.hbm [resolvable:$true] %s176
          %s178 = sshll.u32 [#allocation8], 4
          %s179 = int_to_ptr.vmem [resolvable:$true] %s178
          %181 = dma.hbm_to_vmem [thread:$0]  %s177, 16, %s179, [#allocation7]
        $region16: #{net_shared_forward.1} parent=11 // pred_fallthru
          _
        // Predicated region
        $region17: #{net_shared_forward.1} parent=11 // pred_check
          %p182 = pneg %p113
        $region18: #{net_shared_forward.1} parent=11 // pred_check_branch
          %184 = sbr.rel (%p182) target = $region20
        $region19: #{net_shared_forward.1} parent=11 // pred_region
          _
        $region20: #{net_shared_forward.1} parent=11 // pred_fallthru
          _
        // Predicated region
        $region21: #{net_shared_forward.1} parent=11 // pred_check
          %p185 = pneg %p134
        $region22: #{net_shared_forward.1} parent=11 // pred_check_branch
          %187 = sbr.rel (%p185) target = $region24
        $region23: #{net_shared_forward.1} parent=11 // pred_region
          %189 = vsyncadd [#allocation10], 0
          %s191 = sshll.u32 %s4, 4
          %s192 = int_to_ptr.hbm [resolvable:$true] %s191
          %s193 = sshll.u32 [#allocation9], 4
          %s194 = int_to_ptr.vmem [resolvable:$true] %s193
          %196 = dma.hbm_to_vmem [thread:$0]  %s192, 16, %s194, [#allocation10]
        $region24: #{net_shared_forward.1} parent=11 // pred_fallthru
          _
      $region12: #{net_shared_forward.1} parent=5 // pred_fallthru
        _
      %p197 = scmp.lt.s32.totalorder %s19, 2
      // Predicated region
      $region25: #{net_shared_forward.1} parent=5 // pred_check
        %p198 = pneg %p197
      $region26: #{net_shared_forward.1} parent=5 // pred_check_branch
        %200 = sbr.rel (%p198) target = $region28
      $region27: #{net_shared_forward.1} parent=5 // pred_region
        // Predicated region
        $region29: #{net_shared_forward.1} parent=27 // pred_check
          %p201 = pneg %p39
        $region30: #{net_shared_forward.1} parent=27 // pred_check_branch
          %203 = sbr.rel (%p201) target = $region32
        $region31: #{net_shared_forward.1} parent=27 // pred_region
          %s204 = sand.u32 %s29, 1
          %s205 = scalar_lea.sflag [#allocation4], %s204
          %s206 = sand.u32 %s29, 1
          %s207 = smul.addr %s206, 144
          %s208 = scalar_lea.vmem [#allocation3], %s207
          %s209 = smul.u32 36, %s19
          %211 = vsyncadd %s205, 0
          %s212 = smul.addr %s209, 4
          %s213 = scalar_lea.hbm %s0, %s212
          %s215 = sshll.u32 %s213, 4
          %s216 = int_to_ptr.hbm [resolvable:$true] %s215
          %s217 = sshll.u32 %s208, 4
          %s218 = int_to_ptr.vmem [resolvable:$true] %s217
          %220 = dma.hbm_to_vmem [thread:$0]  %s216, 2304, %s218, %s205
        $region32: #{net_shared_forward.1} parent=27 // pred_fallthru
          _
        // Predicated region
        $region33: #{net_shared_forward.1} parent=27 // pred_check
          %p221 = pneg %p65
        $region34: #{net_shared_forward.1} parent=27 // pred_check_branch
          %223 = sbr.rel (%p221) target = $region36
        $region35: #{net_shared_forward.1} parent=27 // pred_region
          %s224 = sand.u32 %s19, 1
          %s225 = scalar_lea.sflag [#allocation7], %s224
          %s226 = sand.u32 %s55, 1
          %s227 = smul.addr %s226, 2304
          %s228 = scalar_lea.vmem [#allocation6], %s227
          %s229 = smul.u32 576, %s19
          %231 = vsyncadd %s225, 0
          %s232 = smul.addr %s229, 4
          %s233 = scalar_lea.hbm %s1, %s232
          %s234 = sshll.u32 %s233, 4
          %s235 = int_to_ptr.hbm [resolvable:$true] %s234
          %s236 = sshll.u32 %s228, 4
          %s237 = int_to_ptr.vmem [resolvable:$true] %s236
          %242 = dma.hbm_to_vmem [thread:$0]  %s235, 36864, %s237, %s225, 64, 64, 4
        $region36: #{net_shared_forward.1} parent=27 // pred_fallthru
          _
      $region28: #{net_shared_forward.1} parent=5 // pred_fallthru
        _
      %p243 = scmp.le.s32.totalorder 1, %s19
      %p244 = scmp.lt.s32.totalorder %s19, 3
      %p245 = pnand %p243, %p244
      %p246 = pneg %p245
      // Predicated region
      $region37: #{net_shared_forward.1} parent=5 // pred_check
        _
      $region38: #{net_shared_forward.1} parent=5 // pred_check_branch
        %248 = sbr.rel (%p245) target = $region40
      $region39: #{net_shared_forward.1} parent=5 // pred_region
        %s249 = ssub.s32 %s19, 1
        %s250 = sand.u32 %s32, 1
        %s251 = scalar_lea.sflag [#allocation4], %s250
        %s252 = sand.u32 %s32, 1
        %s253 = smul.addr %s252, 144
        %s254 = scalar_lea.vmem [#allocation3], %s253
        // Predicated region
        $region41: #{net_shared_forward.1} parent=39 // pred_check
          %p255 = pneg %p45
        $region42: #{net_shared_forward.1} parent=39 // pred_check_branch
          %257 = sbr.rel (%p255) target = $region44
        $region43: #{net_shared_forward.1} parent=39 // pred_region
          %259 = dma.done %s251, 2304
        $region44: #{net_shared_forward.1} parent=39 // pred_fallthru
          _
        %s260 = sand.u32 %s24, 1
        %s261 = scalar_lea.sflag [#allocation7], %s260
        %s262 = sand.u32 %s58, 1
        %s263 = smul.addr %s262, 2304
        %s264 = scalar_lea.vmem [#allocation6], %s263
        // Predicated region
        $region45: #{net_shared_forward.1} parent=39 // pred_check
          %p265 = pneg %p71
        $region46: #{net_shared_forward.1} parent=39 // pred_check_branch
          %267 = sbr.rel (%p265) target = $region48
        $region47: #{net_shared_forward.1} parent=39 // pred_region
          %269 = dma.done %s261, 36864
        $region48: #{net_shared_forward.1} parent=39 // pred_fallthru
          _
        // Predicated region
        $region49: #{net_shared_forward.1} parent=39 // pred_check
          %p270 = pneg %p92
        $region50: #{net_shared_forward.1} parent=39 // pred_check_branch
          %272 = sbr.rel (%p270) target = $region52
        $region51: #{net_shared_forward.1} parent=39 // pred_region
          %274 = dma.done [#allocation7], 16
        $region52: #{net_shared_forward.1} parent=39 // pred_fallthru
          _
        // Predicated region
        $region53: #{net_shared_forward.1} parent=39 // pred_check
          %p275 = pneg %p134
        $region54: #{net_shared_forward.1} parent=39 // pred_check_branch
          %277 = sbr.rel (%p275) target = $region56
        $region55: #{net_shared_forward.1} parent=39 // pred_region
          %279 = dma.done [#allocation10], 16
        $region56: #{net_shared_forward.1} parent=39 // pred_fallthru
          _
        %s280 = sand.u32 %s32, 1
        %s281 = scalar_lea.sflag [#allocation4], %s280
        %s282 = sand.u32 %s32, 1
        %s283 = smul.addr %s282, 144
        %s284 = scalar_lea.vmem [#allocation3], %s283
        %p285 = pneg %p45
        %p286 = pneg %p42
        %s287 = sand.u32 %s24, 1
        %s288 = scalar_lea.sflag [#allocation7], %s287
        %s289 = sand.u32 %s58, 1
        %s290 = smul.addr %s289, 2304
        %s291 = scalar_lea.vmem [#allocation6], %s290
        %p292 = pneg %p71
        %p293 = pneg %p68
        %p294 = pneg %p92
        %p295 = pneg %p89
        %p296 = pneg %p113
        %p297 = pneg %p110
        %p298 = pneg %p134
        %p299 = pneg %p131
        %p300 = pneg %p155
        %p301 = pneg %p152
        %s302 = smul.u32 36, %s24
        %s303 = smul.u32 576, %s24
        %p304 = scmp.eq.s32.totalorder %s24, 0
        // Predicated region
        $region57: #{net_shared_forward.1} parent=39 // pred_check
          %p305 = pneg %p304
        $region58: #{net_shared_forward.1} parent=39 // pred_check_branch
          %307 = sbr.rel (%p305) target = $region60
        $region59: #{net_shared_forward.1} parent=39 // pred_region
          %308 = vst [vmem:[#allocation2] sm:$0xff] 0.0
        $region60: #{net_shared_forward.1} parent=39 // pred_fallthru
          _
        %v309 = vld [vmem:[#allocation2] sm:$0xff]
        %v310 = vld [vmem:[%s254] sm:$0xff]
        %v311 = vld [vmem:[%s254 + $0x8] sm:$0xff]
        %v312 = vld [vmem:[%s254 + $0x10] sm:$0xff]
        %v313 = vld [vmem:[%s254 + $0x18] sm:$0xff]
        %v314 = vld [vmem:[%s254 + $0x20] sm:$0xff]
        %v315 = vld [vmem:[%s254 + $0x28] sm:$0xff]
        %v316 = vld [vmem:[%s254 + $0x30] sm:$0xff]
        %v317 = vld [vmem:[%s254 + $0x38] sm:$0xff]
        %v318 = vld [vmem:[%s254 + $0x40] sm:$0xff]
        %v319 = vld [vmem:[%s254 + $0x48] sm:$0xff]
        %v320 = vld [vmem:[%s254 + $0x50] sm:$0xff]
        %v321 = vld [vmem:[%s254 + $0x58] sm:$0xff]
        %v322 = vld [vmem:[%s254 + $0x60] sm:$0xff]
        %v323 = vld [vmem:[%s254 + $0x68] sm:$0xff]
        %v324 = vld [vmem:[%s254 + $0x70] sm:$0xff]
        %v325 = vld [vmem:[%s254 + $0x78] sm:$0xff]
        %v326 = vld [vmem:[%s254 + $0x80] sm:$0xff]
        %v327 = vld [vmem:[%s254 + $0x88] sm:$0xff]
        %v328 = vld [vmem:[%s264] sm:$0xf]
        %v329 = vld [vmem:[%s264 + $0x4] sm:$0xf]
        %v330 = vld [vmem:[%s264 + $0x8] sm:$0xf]
        %v331 = vld [vmem:[%s264 + $0xc] sm:$0xf]
        %v332 = vld [vmem:[%s264 + $0x10] sm:$0xf]
        %v333 = vld [vmem:[%s264 + $0x14] sm:$0xf]
        %v334 = vld [vmem:[%s264 + $0x18] sm:$0xf]
        %v335 = vld [vmem:[%s264 + $0x1c] sm:$0xf]
        %v336 = vld [vmem:[%s264 + $0x20] sm:$0xf]
        %v337 = vld [vmem:[%s264 + $0x24] sm:$0xf]
        %v338 = vld [vmem:[%s264 + $0x28] sm:$0xf]
        %v339 = vld [vmem:[%s264 + $0x2c] sm:$0xf]
        %v340 = vld [vmem:[%s264 + $0x30] sm:$0xf]
        %v341 = vld [vmem:[%s264 + $0x34] sm:$0xf]
        %v342 = vld [vmem:[%s264 + $0x38] sm:$0xf]
        %v343 = vld [vmem:[%s264 + $0x3c] sm:$0xf]
        %v344 = vld [vmem:[%s264 + $0x40] sm:$0xf]
        %v345 = vld [vmem:[%s264 + $0x44] sm:$0xf]
        %v346 = vld [vmem:[%s264 + $0x48] sm:$0xf]
        %v347 = vld [vmem:[%s264 + $0x4c] sm:$0xf]
        %v348 = vld [vmem:[%s264 + $0x50] sm:$0xf]
        %v349 = vld [vmem:[%s264 + $0x54] sm:$0xf]
        %v350 = vld [vmem:[%s264 + $0x58] sm:$0xf]
        %v351 = vld [vmem:[%s264 + $0x5c] sm:$0xf]
        %v352 = vld [vmem:[%s264 + $0x60] sm:$0xf]
        %v353 = vld [vmem:[%s264 + $0x64] sm:$0xf]
        %v354 = vld [vmem:[%s264 + $0x68] sm:$0xf]
        %v355 = vld [vmem:[%s264 + $0x6c] sm:$0xf]
        %v356 = vld [vmem:[%s264 + $0x70] sm:$0xf]
        %v357 = vld [vmem:[%s264 + $0x74] sm:$0xf]
        %v358 = vld [vmem:[%s264 + $0x78] sm:$0xf]
        %v359 = vld [vmem:[%s264 + $0x7c] sm:$0xf]
        %v360 = vld [vmem:[%s264 + $0x80] sm:$0xf]
        %v361 = vld [vmem:[%s264 + $0x84] sm:$0xf]
        %v362 = vld [vmem:[%s264 + $0x88] sm:$0xf]
        %v363 = vld [vmem:[%s264 + $0x8c] sm:$0xf]
        %v364 = vld [vmem:[%s264 + $0x90] sm:$0xf]
        %v365 = vld [vmem:[%s264 + $0x94] sm:$0xf]
        %v366 = vld [vmem:[%s264 + $0x98] sm:$0xf]
        %v367 = vld [vmem:[%s264 + $0x9c] sm:$0xf]
        %v368 = vld [vmem:[%s264 + $0xa0] sm:$0xf]
        %v369 = vld [vmem:[%s264 + $0xa4] sm:$0xf]
        %v370 = vld [vmem:[%s264 + $0xa8] sm:$0xf]
        %v371 = vld [vmem:[%s264 + $0xac] sm:$0xf]
        %v372 = vld [vmem:[%s264 + $0xb0] sm:$0xf]
        %v373 = vld [vmem:[%s264 + $0xb4] sm:$0xf]
        %v374 = vld [vmem:[%s264 + $0xb8] sm:$0xf]
        %v375 = vld [vmem:[%s264 + $0xbc] sm:$0xf]
        %v376 = vld [vmem:[%s264 + $0xc0] sm:$0xf]
        %v377 = vld [vmem:[%s264 + $0xc4] sm:$0xf]
        %v378 = vld [vmem:[%s264 + $0xc8] sm:$0xf]
        %v379 = vld [vmem:[%s264 + $0xcc] sm:$0xf]
        %v380 = vld [vmem:[%s264 + $0xd0] sm:$0xf]
        %v381 = vld [vmem:[%s264 + $0xd4] sm:$0xf]
        %v382 = vld [vmem:[%s264 + $0xd8] sm:$0xf]
        %v383 = vld [vmem:[%s264 + $0xdc] sm:$0xf]
        %v384 = vld [vmem:[%s264 + $0xe0] sm:$0xf]
        %v385 = vld [vmem:[%s264 + $0xe4] sm:$0xf]
        %v386 = vld [vmem:[%s264 + $0xe8] sm:$0xf]
        %v387 = vld [vmem:[%s264 + $0xec] sm:$0xf]
        %v388 = vld [vmem:[%s264 + $0xf0] sm:$0xf]
        %v389 = vld [vmem:[%s264 + $0xf4] sm:$0xf]
        %v390 = vld [vmem:[%s264 + $0xf8] sm:$0xf]
        %v391 = vld [vmem:[%s264 + $0xfc] sm:$0xf]
        %v392 = vld [vmem:[%s264 + $0x100] sm:$0xf]
        %v393 = vld [vmem:[%s264 + $0x104] sm:$0xf]
        %v394 = vld [vmem:[%s264 + $0x108] sm:$0xf]
        %v395 = vld [vmem:[%s264 + $0x10c] sm:$0xf]
        %v396 = vld [vmem:[%s264 + $0x110] sm:$0xf]
        %v397 = vld [vmem:[%s264 + $0x114] sm:$0xf]
        %v398 = vld [vmem:[%s264 + $0x118] sm:$0xf]
        %v399 = vld [vmem:[%s264 + $0x11c] sm:$0xf]
        %v400 = vld [vmem:[%s264 + $0x120] sm:$0xf]
        %v401 = vld [vmem:[%s264 + $0x124] sm:$0xf]
        %v402 = vld [vmem:[%s264 + $0x128] sm:$0xf]
        %v403 = vld [vmem:[%s264 + $0x12c] sm:$0xf]
        %v404 = vld [vmem:[%s264 + $0x130] sm:$0xf]
        %v405 = vld [vmem:[%s264 + $0x134] sm:$0xf]
        %v406 = vld [vmem:[%s264 + $0x138] sm:$0xf]
        %v407 = vld [vmem:[%s264 + $0x13c] sm:$0xf]
        %v408 = vld [vmem:[%s264 + $0x140] sm:$0xf]
        %v409 = vld [vmem:[%s264 + $0x144] sm:$0xf]
        %v410 = vld [vmem:[%s264 + $0x148] sm:$0xf]
        %v411 = vld [vmem:[%s264 + $0x14c] sm:$0xf]
        %v412 = vld [vmem:[%s264 + $0x150] sm:$0xf]
        %v413 = vld [vmem:[%s264 + $0x154] sm:$0xf]
        %v414 = vld [vmem:[%s264 + $0x158] sm:$0xf]
        %v415 = vld [vmem:[%s264 + $0x15c] sm:$0xf]
        %v416 = vld [vmem:[%s264 + $0x160] sm:$0xf]
        %v417 = vld [vmem:[%s264 + $0x164] sm:$0xf]
        %v418 = vld [vmem:[%s264 + $0x168] sm:$0xf]
        %v419 = vld [vmem:[%s264 + $0x16c] sm:$0xf]
        %v420 = vld [vmem:[%s264 + $0x170] sm:$0xf]
        %v421 = vld [vmem:[%s264 + $0x174] sm:$0xf]
        %v422 = vld [vmem:[%s264 + $0x178] sm:$0xf]
        %v423 = vld [vmem:[%s264 + $0x17c] sm:$0xf]
        %v424 = vld [vmem:[%s264 + $0x180] sm:$0xf]
        %v425 = vld [vmem:[%s264 + $0x184] sm:$0xf]
        %v426 = vld [vmem:[%s264 + $0x188] sm:$0xf]
        %v427 = vld [vmem:[%s264 + $0x18c] sm:$0xf]
        %v428 = vld [vmem:[%s264 + $0x190] sm:$0xf]
        %v429 = vld [vmem:[%s264 + $0x194] sm:$0xf]
        %v430 = vld [vmem:[%s264 + $0x198] sm:$0xf]
        %v431 = vld [vmem:[%s264 + $0x19c] sm:$0xf]
        %v432 = vld [vmem:[%s264 + $0x1a0] sm:$0xf]
        %v433 = vld [vmem:[%s264 + $0x1a4] sm:$0xf]
        %v434 = vld [vmem:[%s264 + $0x1a8] sm:$0xf]
        %v435 = vld [vmem:[%s264 + $0x1ac] sm:$0xf]
        %v436 = vld [vmem:[%s264 + $0x1b0] sm:$0xf]
        %v437 = vld [vmem:[%s264 + $0x1b4] sm:$0xf]
        %v438 = vld [vmem:[%s264 + $0x1b8] sm:$0xf]
        %v439 = vld [vmem:[%s264 + $0x1bc] sm:$0xf]
        %v440 = vld [vmem:[%s264 + $0x1c0] sm:$0xf]
        %v441 = vld [vmem:[%s264 + $0x1c4] sm:$0xf]
        %v442 = vld [vmem:[%s264 + $0x1c8] sm:$0xf]
        %v443 = vld [vmem:[%s264 + $0x1cc] sm:$0xf]
        %v444 = vld [vmem:[%s264 + $0x1d0] sm:$0xf]
        %v445 = vld [vmem:[%s264 + $0x1d4] sm:$0xf]
        %v446 = vld [vmem:[%s264 + $0x1d8] sm:$0xf]
        %v447 = vld [vmem:[%s264 + $0x1dc] sm:$0xf]
        %v448 = vld [vmem:[%s264 + $0x1e0] sm:$0xf]
        %v449 = vld [vmem:[%s264 + $0x1e4] sm:$0xf]
        %v450 = vld [vmem:[%s264 + $0x1e8] sm:$0xf]
        %v451 = vld [vmem:[%s264 + $0x1ec] sm:$0xf]
        %v452 = vld [vmem:[%s264 + $0x1f0] sm:$0xf]
        %v453 = vld [vmem:[%s264 + $0x1f4] sm:$0xf]
        %v454 = vld [vmem:[%s264 + $0x1f8] sm:$0xf]
        %v455 = vld [vmem:[%s264 + $0x1fc] sm:$0xf]
        %v456 = vld [vmem:[%s264 + $0x200] sm:$0xf]
        %v457 = vld [vmem:[%s264 + $0x204] sm:$0xf]
        %v458 = vld [vmem:[%s264 + $0x208] sm:$0xf]
        %v459 = vld [vmem:[%s264 + $0x20c] sm:$0xf]
        %v460 = vld [vmem:[%s264 + $0x210] sm:$0xf]
        %v461 = vld [vmem:[%s264 + $0x214] sm:$0xf]
        %v462 = vld [vmem:[%s264 + $0x218] sm:$0xf]
        %v463 = vld [vmem:[%s264 + $0x21c] sm:$0xf]
        %v464 = vld [vmem:[%s264 + $0x220] sm:$0xf]
        %v465 = vld [vmem:[%s264 + $0x224] sm:$0xf]
        %v466 = vld [vmem:[%s264 + $0x228] sm:$0xf]
        %v467 = vld [vmem:[%s264 + $0x22c] sm:$0xf]
        %v468 = vld [vmem:[%s264 + $0x230] sm:$0xf]
        %v469 = vld [vmem:[%s264 + $0x234] sm:$0xf]
        %v470 = vld [vmem:[%s264 + $0x238] sm:$0xf]
        %v471 = vld [vmem:[%s264 + $0x23c] sm:$0xf]
        %v472 = vld [vmem:[%s264 + $0x240] sm:$0xf]
        %v473 = vld [vmem:[%s264 + $0x244] sm:$0xf]
        %v474 = vld [vmem:[%s264 + $0x248] sm:$0xf]
        %v475 = vld [vmem:[%s264 + $0x24c] sm:$0xf]
        %v476 = vld [vmem:[%s264 + $0x250] sm:$0xf]
        %v477 = vld [vmem:[%s264 + $0x254] sm:$0xf]
        %v478 = vld [vmem:[%s264 + $0x258] sm:$0xf]
        %v479 = vld [vmem:[%s264 + $0x25c] sm:$0xf]
        %v480 = vld [vmem:[%s264 + $0x260] sm:$0xf]
        %v481 = vld [vmem:[%s264 + $0x264] sm:$0xf]
        %v482 = vld [vmem:[%s264 + $0x268] sm:$0xf]
        %v483 = vld [vmem:[%s264 + $0x26c] sm:$0xf]
        %v484 = vld [vmem:[%s264 + $0x270] sm:$0xf]
        %v485 = vld [vmem:[%s264 + $0x274] sm:$0xf]
        %v486 = vld [vmem:[%s264 + $0x278] sm:$0xf]
        %v487 = vld [vmem:[%s264 + $0x27c] sm:$0xf]
        %v488 = vld [vmem:[%s264 + $0x280] sm:$0xf]
        %v489 = vld [vmem:[%s264 + $0x284] sm:$0xf]
        %v490 = vld [vmem:[%s264 + $0x288] sm:$0xf]
        %v491 = vld [vmem:[%s264 + $0x28c] sm:$0xf]
        %v492 = vld [vmem:[%s264 + $0x290] sm:$0xf]
        %v493 = vld [vmem:[%s264 + $0x294] sm:$0xf]
        %v494 = vld [vmem:[%s264 + $0x298] sm:$0xf]
        %v495 = vld [vmem:[%s264 + $0x29c] sm:$0xf]
        %v496 = vld [vmem:[%s264 + $0x2a0] sm:$0xf]
        %v497 = vld [vmem:[%s264 + $0x2a4] sm:$0xf]
        %v498 = vld [vmem:[%s264 + $0x2a8] sm:$0xf]
        %v499 = vld [vmem:[%s264 + $0x2ac] sm:$0xf]
        %v500 = vld [vmem:[%s264 + $0x2b0] sm:$0xf]
        %v501 = vld [vmem:[%s264 + $0x2b4] sm:$0xf]
        %v502 = vld [vmem:[%s264 + $0x2b8] sm:$0xf]
        %v503 = vld [vmem:[%s264 + $0x2bc] sm:$0xf]
        %v504 = vld [vmem:[%s264 + $0x2c0] sm:$0xf]
        %v505 = vld [vmem:[%s264 + $0x2c4] sm:$0xf]
        %v506 = vld [vmem:[%s264 + $0x2c8] sm:$0xf]
        %v507 = vld [vmem:[%s264 + $0x2cc] sm:$0xf]
        %v508 = vld [vmem:[%s264 + $0x2d0] sm:$0xf]
        %v509 = vld [vmem:[%s264 + $0x2d4] sm:$0xf]
        %v510 = vld [vmem:[%s264 + $0x2d8] sm:$0xf]
        %v511 = vld [vmem:[%s264 + $0x2dc] sm:$0xf]
        %v512 = vld [vmem:[%s264 + $0x2e0] sm:$0xf]
        %v513 = vld [vmem:[%s264 + $0x2e4] sm:$0xf]
        %v514 = vld [vmem:[%s264 + $0x2e8] sm:$0xf]
        %v515 = vld [vmem:[%s264 + $0x2ec] sm:$0xf]
        %v516 = vld [vmem:[%s264 + $0x2f0] sm:$0xf]
        %v517 = vld [vmem:[%s264 + $0x2f4] sm:$0xf]
        %v518 = vld [vmem:[%s264 + $0x2f8] sm:$0xf]
        %v519 = vld [vmem:[%s264 + $0x2fc] sm:$0xf]
        %v520 = vld [vmem:[%s264 + $0x300] sm:$0xf]
        %v521 = vld [vmem:[%s264 + $0x304] sm:$0xf]
        %v522 = vld [vmem:[%s264 + $0x308] sm:$0xf]
        %v523 = vld [vmem:[%s264 + $0x30c] sm:$0xf]
        %v524 = vld [vmem:[%s264 + $0x310] sm:$0xf]
        %v525 = vld [vmem:[%s264 + $0x314] sm:$0xf]
        %v526 = vld [vmem:[%s264 + $0x318] sm:$0xf]
        %v527 = vld [vmem:[%s264 + $0x31c] sm:$0xf]
        %v528 = vld [vmem:[%s264 + $0x320] sm:$0xf]
        %v529 = vld [vmem:[%s264 + $0x324] sm:$0xf]
        %v530 = vld [vmem:[%s264 + $0x328] sm:$0xf]
        %v531 = vld [vmem:[%s264 + $0x32c] sm:$0xf]
        %v532 = vld [vmem:[%s264 + $0x330] sm:$0xf]
        %v533 = vld [vmem:[%s264 + $0x334] sm:$0xf]
        %v534 = vld [vmem:[%s264 + $0x338] sm:$0xf]
        %v535 = vld [vmem:[%s264 + $0x33c] sm:$0xf]
        %v536 = vld [vmem:[%s264 + $0x340] sm:$0xf]
        %v537 = vld [vmem:[%s264 + $0x344] sm:$0xf]
        %v538 = vld [vmem:[%s264 + $0x348] sm:$0xf]
        %v539 = vld [vmem:[%s264 + $0x34c] sm:$0xf]
        %v540 = vld [vmem:[%s264 + $0x350] sm:$0xf]
        %v541 = vld [vmem:[%s264 + $0x354] sm:$0xf]
        %v542 = vld [vmem:[%s264 + $0x358] sm:$0xf]
        %v543 = vld [vmem:[%s264 + $0x35c] sm:$0xf]
        %v544 = vld [vmem:[%s264 + $0x360] sm:$0xf]
        %v545 = vld [vmem:[%s264 + $0x364] sm:$0xf]
        %v546 = vld [vmem:[%s264 + $0x368] sm:$0xf]
        %v547 = vld [vmem:[%s264 + $0x36c] sm:$0xf]
        %v548 = vld [vmem:[%s264 + $0x370] sm:$0xf]
        %v549 = vld [vmem:[%s264 + $0x374] sm:$0xf]
        %v550 = vld [vmem:[%s264 + $0x378] sm:$0xf]
        %v551 = vld [vmem:[%s264 + $0x37c] sm:$0xf]
        %v552 = vld [vmem:[%s264 + $0x380] sm:$0xf]
        %v553 = vld [vmem:[%s264 + $0x384] sm:$0xf]
        %v554 = vld [vmem:[%s264 + $0x388] sm:$0xf]
        %v555 = vld [vmem:[%s264 + $0x38c] sm:$0xf]
        %v556 = vld [vmem:[%s264 + $0x390] sm:$0xf]
        %v557 = vld [vmem:[%s264 + $0x394] sm:$0xf]
        %v558 = vld [vmem:[%s264 + $0x398] sm:$0xf]
        %v559 = vld [vmem:[%s264 + $0x39c] sm:$0xf]
        %v560 = vld [vmem:[%s264 + $0x3a0] sm:$0xf]
        %v561 = vld [vmem:[%s264 + $0x3a4] sm:$0xf]
        %v562 = vld [vmem:[%s264 + $0x3a8] sm:$0xf]
        %v563 = vld [vmem:[%s264 + $0x3ac] sm:$0xf]
        %v564 = vld [vmem:[%s264 + $0x3b0] sm:$0xf]
        %v565 = vld [vmem:[%s264 + $0x3b4] sm:$0xf]
        %v566 = vld [vmem:[%s264 + $0x3b8] sm:$0xf]
        %v567 = vld [vmem:[%s264 + $0x3bc] sm:$0xf]
        %v568 = vld [vmem:[%s264 + $0x3c0] sm:$0xf]
        %v569 = vld [vmem:[%s264 + $0x3c4] sm:$0xf]
        %v570 = vld [vmem:[%s264 + $0x3c8] sm:$0xf]
        %v571 = vld [vmem:[%s264 + $0x3cc] sm:$0xf]
        %v572 = vld [vmem:[%s264 + $0x3d0] sm:$0xf]
        %v573 = vld [vmem:[%s264 + $0x3d4] sm:$0xf]
        %v574 = vld [vmem:[%s264 + $0x3d8] sm:$0xf]
        %v575 = vld [vmem:[%s264 + $0x3dc] sm:$0xf]
        %v576 = vld [vmem:[%s264 + $0x3e0] sm:$0xf]
        %v577 = vld [vmem:[%s264 + $0x3e4] sm:$0xf]
        %v578 = vld [vmem:[%s264 + $0x3e8] sm:$0xf]
        %v579 = vld [vmem:[%s264 + $0x3ec] sm:$0xf]
        %v580 = vld [vmem:[%s264 + $0x3f0] sm:$0xf]
        %v581 = vld [vmem:[%s264 + $0x3f4] sm:$0xf]
        %v582 = vld [vmem:[%s264 + $0x3f8] sm:$0xf]
        %v583 = vld [vmem:[%s264 + $0x3fc] sm:$0xf]
        %v584 = vld [vmem:[%s264 + $0x400] sm:$0xf]
        %v585 = vld [vmem:[%s264 + $0x404] sm:$0xf]
        %v586 = vld [vmem:[%s264 + $0x408] sm:$0xf]
        %v587 = vld [vmem:[%s264 + $0x40c] sm:$0xf]
        %v588 = vld [vmem:[%s264 + $0x410] sm:$0xf]
        %v589 = vld [vmem:[%s264 + $0x414] sm:$0xf]
        %v590 = vld [vmem:[%s264 + $0x418] sm:$0xf]
        %v591 = vld [vmem:[%s264 + $0x41c] sm:$0xf]
        %v592 = vld [vmem:[%s264 + $0x420] sm:$0xf]
        %v593 = vld [vmem:[%s264 + $0x424] sm:$0xf]
        %v594 = vld [vmem:[%s264 + $0x428] sm:$0xf]
        %v595 = vld [vmem:[%s264 + $0x42c] sm:$0xf]
        %v596 = vld [vmem:[%s264 + $0x430] sm:$0xf]
        %v597 = vld [vmem:[%s264 + $0x434] sm:$0xf]
        %v598 = vld [vmem:[%s264 + $0x438] sm:$0xf]
        %v599 = vld [vmem:[%s264 + $0x43c] sm:$0xf]
        %v600 = vld [vmem:[%s264 + $0x440] sm:$0xf]
        %v601 = vld [vmem:[%s264 + $0x444] sm:$0xf]
        %v602 = vld [vmem:[%s264 + $0x448] sm:$0xf]
        %v603 = vld [vmem:[%s264 + $0x44c] sm:$0xf]
        %v604 = vld [vmem:[%s264 + $0x450] sm:$0xf]
        %v605 = vld [vmem:[%s264 + $0x454] sm:$0xf]
        %v606 = vld [vmem:[%s264 + $0x458] sm:$0xf]
        %v607 = vld [vmem:[%s264 + $0x45c] sm:$0xf]
        %v608 = vld [vmem:[%s264 + $0x460] sm:$0xf]
        %v609 = vld [vmem:[%s264 + $0x464] sm:$0xf]
        %v610 = vld [vmem:[%s264 + $0x468] sm:$0xf]
        %v611 = vld [vmem:[%s264 + $0x46c] sm:$0xf]
        %v612 = vld [vmem:[%s264 + $0x470] sm:$0xf]
        %v613 = vld [vmem:[%s264 + $0x474] sm:$0xf]
        %v614 = vld [vmem:[%s264 + $0x478] sm:$0xf]
        %v615 = vld [vmem:[%s264 + $0x47c] sm:$0xf]
        %v616 = vld [vmem:[%s264 + $0x480] sm:$0xf]
        %v617 = vld [vmem:[%s264 + $0x484] sm:$0xf]
        %v618 = vld [vmem:[%s264 + $0x488] sm:$0xf]
        %v619 = vld [vmem:[%s264 + $0x48c] sm:$0xf]
        %v620 = vld [vmem:[%s264 + $0x490] sm:$0xf]
        %v621 = vld [vmem:[%s264 + $0x494] sm:$0xf]
        %v622 = vld [vmem:[%s264 + $0x498] sm:$0xf]
        %v623 = vld [vmem:[%s264 + $0x49c] sm:$0xf]
        %v624 = vld [vmem:[%s264 + $0x4a0] sm:$0xf]
        %v625 = vld [vmem:[%s264 + $0x4a4] sm:$0xf]
        %v626 = vld [vmem:[%s264 + $0x4a8] sm:$0xf]
        %v627 = vld [vmem:[%s264 + $0x4ac] sm:$0xf]
        %v628 = vld [vmem:[%s264 + $0x4b0] sm:$0xf]
        %v629 = vld [vmem:[%s264 + $0x4b4] sm:$0xf]
        %v630 = vld [vmem:[%s264 + $0x4b8] sm:$0xf]
        %v631 = vld [vmem:[%s264 + $0x4bc] sm:$0xf]
        %v632 = vld [vmem:[%s264 + $0x4c0] sm:$0xf]
        %v633 = vld [vmem:[%s264 + $0x4c4] sm:$0xf]
        %v634 = vld [vmem:[%s264 + $0x4c8] sm:$0xf]
        %v635 = vld [vmem:[%s264 + $0x4cc] sm:$0xf]
        %v636 = vld [vmem:[%s264 + $0x4d0] sm:$0xf]
        %v637 = vld [vmem:[%s264 + $0x4d4] sm:$0xf]
        %v638 = vld [vmem:[%s264 + $0x4d8] sm:$0xf]
        %v639 = vld [vmem:[%s264 + $0x4dc] sm:$0xf]
        %v640 = vld [vmem:[%s264 + $0x4e0] sm:$0xf]
        %v641 = vld [vmem:[%s264 + $0x4e4] sm:$0xf]
        %v642 = vld [vmem:[%s264 + $0x4e8] sm:$0xf]
        %v643 = vld [vmem:[%s264 + $0x4ec] sm:$0xf]
        %v644 = vld [vmem:[%s264 + $0x4f0] sm:$0xf]
        %v645 = vld [vmem:[%s264 + $0x4f4] sm:$0xf]
        %v646 = vld [vmem:[%s264 + $0x4f8] sm:$0xf]
        %v647 = vld [vmem:[%s264 + $0x4fc] sm:$0xf]
        %v648 = vld [vmem:[%s264 + $0x500] sm:$0xf]
        %v649 = vld [vmem:[%s264 + $0x504] sm:$0xf]
        %v650 = vld [vmem:[%s264 + $0x508] sm:$0xf]
        %v651 = vld [vmem:[%s264 + $0x50c] sm:$0xf]
        %v652 = vld [vmem:[%s264 + $0x510] sm:$0xf]
        %v653 = vld [vmem:[%s264 + $0x514] sm:$0xf]
        %v654 = vld [vmem:[%s264 + $0x518] sm:$0xf]
        %v655 = vld [vmem:[%s264 + $0x51c] sm:$0xf]
        %v656 = vld [vmem:[%s264 + $0x520] sm:$0xf]
        %v657 = vld [vmem:[%s264 + $0x524] sm:$0xf]
        %v658 = vld [vmem:[%s264 + $0x528] sm:$0xf]
        %v659 = vld [vmem:[%s264 + $0x52c] sm:$0xf]
        %v660 = vld [vmem:[%s264 + $0x530] sm:$0xf]
        %v661 = vld [vmem:[%s264 + $0x534] sm:$0xf]
        %v662 = vld [vmem:[%s264 + $0x538] sm:$0xf]
        %v663 = vld [vmem:[%s264 + $0x53c] sm:$0xf]
        %v664 = vld [vmem:[%s264 + $0x540] sm:$0xf]
        %v665 = vld [vmem:[%s264 + $0x544] sm:$0xf]
        %v666 = vld [vmem:[%s264 + $0x548] sm:$0xf]
        %v667 = vld [vmem:[%s264 + $0x54c] sm:$0xf]
        %v668 = vld [vmem:[%s264 + $0x550] sm:$0xf]
        %v669 = vld [vmem:[%s264 + $0x554] sm:$0xf]
        %v670 = vld [vmem:[%s264 + $0x558] sm:$0xf]
        %v671 = vld [vmem:[%s264 + $0x55c] sm:$0xf]
        %v672 = vld [vmem:[%s264 + $0x560] sm:$0xf]
        %v673 = vld [vmem:[%s264 + $0x564] sm:$0xf]
        %v674 = vld [vmem:[%s264 + $0x568] sm:$0xf]
        %v675 = vld [vmem:[%s264 + $0x56c] sm:$0xf]
        %v676 = vld [vmem:[%s264 + $0x570] sm:$0xf]
        %v677 = vld [vmem:[%s264 + $0x574] sm:$0xf]
        %v678 = vld [vmem:[%s264 + $0x578] sm:$0xf]
        %v679 = vld [vmem:[%s264 + $0x57c] sm:$0xf]
        %v680 = vld [vmem:[%s264 + $0x580] sm:$0xf]
        %v681 = vld [vmem:[%s264 + $0x584] sm:$0xf]
        %v682 = vld [vmem:[%s264 + $0x588] sm:$0xf]
        %v683 = vld [vmem:[%s264 + $0x58c] sm:$0xf]
        %v684 = vld [vmem:[%s264 + $0x590] sm:$0xf]
        %v685 = vld [vmem:[%s264 + $0x594] sm:$0xf]
        %v686 = vld [vmem:[%s264 + $0x598] sm:$0xf]
        %v687 = vld [vmem:[%s264 + $0x59c] sm:$0xf]
        %v688 = vld [vmem:[%s264 + $0x5a0] sm:$0xf]
        %v689 = vld [vmem:[%s264 + $0x5a4] sm:$0xf]
        %v690 = vld [vmem:[%s264 + $0x5a8] sm:$0xf]
        %v691 = vld [vmem:[%s264 + $0x5ac] sm:$0xf]
        %v692 = vld [vmem:[%s264 + $0x5b0] sm:$0xf]
        %v693 = vld [vmem:[%s264 + $0x5b4] sm:$0xf]
        %v694 = vld [vmem:[%s264 + $0x5b8] sm:$0xf]
        %v695 = vld [vmem:[%s264 + $0x5bc] sm:$0xf]
        %v696 = vld [vmem:[%s264 + $0x5c0] sm:$0xf]
        %v697 = vld [vmem:[%s264 + $0x5c4] sm:$0xf]
        %v698 = vld [vmem:[%s264 + $0x5c8] sm:$0xf]
        %v699 = vld [vmem:[%s264 + $0x5cc] sm:$0xf]
        %v700 = vld [vmem:[%s264 + $0x5d0] sm:$0xf]
        %v701 = vld [vmem:[%s264 + $0x5d4] sm:$0xf]
        %v702 = vld [vmem:[%s264 + $0x5d8] sm:$0xf]
        %v703 = vld [vmem:[%s264 + $0x5dc] sm:$0xf]
        %v704 = vld [vmem:[%s264 + $0x5e0] sm:$0xf]
        %v705 = vld [vmem:[%s264 + $0x5e4] sm:$0xf]
        %v706 = vld [vmem:[%s264 + $0x5e8] sm:$0xf]
        %v707 = vld [vmem:[%s264 + $0x5ec] sm:$0xf]
        %v708 = vld [vmem:[%s264 + $0x5f0] sm:$0xf]
        %v709 = vld [vmem:[%s264 + $0x5f4] sm:$0xf]
        %v710 = vld [vmem:[%s264 + $0x5f8] sm:$0xf]
        %v711 = vld [vmem:[%s264 + $0x5fc] sm:$0xf]
        %v712 = vld [vmem:[%s264 + $0x600] sm:$0xf]
        %v713 = vld [vmem:[%s264 + $0x604] sm:$0xf]
        %v714 = vld [vmem:[%s264 + $0x608] sm:$0xf]
        %v715 = vld [vmem:[%s264 + $0x60c] sm:$0xf]
        %v716 = vld [vmem:[%s264 + $0x610] sm:$0xf]
        %v717 = vld [vmem:[%s264 + $0x614] sm:$0xf]
        %v718 = vld [vmem:[%s264 + $0x618] sm:$0xf]
        %v719 = vld [vmem:[%s264 + $0x61c] sm:$0xf]
        %v720 = vld [vmem:[%s264 + $0x620] sm:$0xf]
        %v721 = vld [vmem:[%s264 + $0x624] sm:$0xf]
        %v722 = vld [vmem:[%s264 + $0x628] sm:$0xf]
        %v723 = vld [vmem:[%s264 + $0x62c] sm:$0xf]
        %v724 = vld [vmem:[%s264 + $0x630] sm:$0xf]
        %v725 = vld [vmem:[%s264 + $0x634] sm:$0xf]
        %v726 = vld [vmem:[%s264 + $0x638] sm:$0xf]
        %v727 = vld [vmem:[%s264 + $0x63c] sm:$0xf]
        %v728 = vld [vmem:[%s264 + $0x640] sm:$0xf]
        %v729 = vld [vmem:[%s264 + $0x644] sm:$0xf]
        %v730 = vld [vmem:[%s264 + $0x648] sm:$0xf]
        %v731 = vld [vmem:[%s264 + $0x64c] sm:$0xf]
        %v732 = vld [vmem:[%s264 + $0x650] sm:$0xf]
        %v733 = vld [vmem:[%s264 + $0x654] sm:$0xf]
        %v734 = vld [vmem:[%s264 + $0x658] sm:$0xf]
        %v735 = vld [vmem:[%s264 + $0x65c] sm:$0xf]
        %v736 = vld [vmem:[%s264 + $0x660] sm:$0xf]
        %v737 = vld [vmem:[%s264 + $0x664] sm:$0xf]
        %v738 = vld [vmem:[%s264 + $0x668] sm:$0xf]
        %v739 = vld [vmem:[%s264 + $0x66c] sm:$0xf]
        %v740 = vld [vmem:[%s264 + $0x670] sm:$0xf]
        %v741 = vld [vmem:[%s264 + $0x674] sm:$0xf]
        %v742 = vld [vmem:[%s264 + $0x678] sm:$0xf]
        %v743 = vld [vmem:[%s264 + $0x67c] sm:$0xf]
        %v744 = vld [vmem:[%s264 + $0x680] sm:$0xf]
        %v745 = vld [vmem:[%s264 + $0x684] sm:$0xf]
        %v746 = vld [vmem:[%s264 + $0x688] sm:$0xf]
        %v747 = vld [vmem:[%s264 + $0x68c] sm:$0xf]
        %v748 = vld [vmem:[%s264 + $0x690] sm:$0xf]
        %v749 = vld [vmem:[%s264 + $0x694] sm:$0xf]
        %v750 = vld [vmem:[%s264 + $0x698] sm:$0xf]
        %v751 = vld [vmem:[%s264 + $0x69c] sm:$0xf]
        %v752 = vld [vmem:[%s264 + $0x6a0] sm:$0xf]
        %v753 = vld [vmem:[%s264 + $0x6a4] sm:$0xf]
        %v754 = vld [vmem:[%s264 + $0x6a8] sm:$0xf]
        %v755 = vld [vmem:[%s264 + $0x6ac] sm:$0xf]
        %v756 = vld [vmem:[%s264 + $0x6b0] sm:$0xf]
        %v757 = vld [vmem:[%s264 + $0x6b4] sm:$0xf]
        %v758 = vld [vmem:[%s264 + $0x6b8] sm:$0xf]
        %v759 = vld [vmem:[%s264 + $0x6bc] sm:$0xf]
        %v760 = vld [vmem:[%s264 + $0x6c0] sm:$0xf]
        %v761 = vld [vmem:[%s264 + $0x6c4] sm:$0xf]
        %v762 = vld [vmem:[%s264 + $0x6c8] sm:$0xf]
        %v763 = vld [vmem:[%s264 + $0x6cc] sm:$0xf]
        %v764 = vld [vmem:[%s264 + $0x6d0] sm:$0xf]
        %v765 = vld [vmem:[%s264 + $0x6d4] sm:$0xf]
        %v766 = vld [vmem:[%s264 + $0x6d8] sm:$0xf]
        %v767 = vld [vmem:[%s264 + $0x6dc] sm:$0xf]
        %v768 = vld [vmem:[%s264 + $0x6e0] sm:$0xf]
        %v769 = vld [vmem:[%s264 + $0x6e4] sm:$0xf]
        %v770 = vld [vmem:[%s264 + $0x6e8] sm:$0xf]
        %v771 = vld [vmem:[%s264 + $0x6ec] sm:$0xf]
        %v772 = vld [vmem:[%s264 + $0x6f0] sm:$0xf]
        %v773 = vld [vmem:[%s264 + $0x6f4] sm:$0xf]
        %v774 = vld [vmem:[%s264 + $0x6f8] sm:$0xf]
        %v775 = vld [vmem:[%s264 + $0x6fc] sm:$0xf]
        %v776 = vld [vmem:[%s264 + $0x700] sm:$0xf]
        %v777 = vld [vmem:[%s264 + $0x704] sm:$0xf]
        %v778 = vld [vmem:[%s264 + $0x708] sm:$0xf]
        %v779 = vld [vmem:[%s264 + $0x70c] sm:$0xf]
        %v780 = vld [vmem:[%s264 + $0x710] sm:$0xf]
        %v781 = vld [vmem:[%s264 + $0x714] sm:$0xf]
        %v782 = vld [vmem:[%s264 + $0x718] sm:$0xf]
        %v783 = vld [vmem:[%s264 + $0x71c] sm:$0xf]
        %v784 = vld [vmem:[%s264 + $0x720] sm:$0xf]
        %v785 = vld [vmem:[%s264 + $0x724] sm:$0xf]
        %v786 = vld [vmem:[%s264 + $0x728] sm:$0xf]
        %v787 = vld [vmem:[%s264 + $0x72c] sm:$0xf]
        %v788 = vld [vmem:[%s264 + $0x730] sm:$0xf]
        %v789 = vld [vmem:[%s264 + $0x734] sm:$0xf]
        %v790 = vld [vmem:[%s264 + $0x738] sm:$0xf]
        %v791 = vld [vmem:[%s264 + $0x73c] sm:$0xf]
        %v792 = vld [vmem:[%s264 + $0x740] sm:$0xf]
        %v793 = vld [vmem:[%s264 + $0x744] sm:$0xf]
        %v794 = vld [vmem:[%s264 + $0x748] sm:$0xf]
        %v795 = vld [vmem:[%s264 + $0x74c] sm:$0xf]
        %v796 = vld [vmem:[%s264 + $0x750] sm:$0xf]
        %v797 = vld [vmem:[%s264 + $0x754] sm:$0xf]
        %v798 = vld [vmem:[%s264 + $0x758] sm:$0xf]
        %v799 = vld [vmem:[%s264 + $0x75c] sm:$0xf]
        %v800 = vld [vmem:[%s264 + $0x760] sm:$0xf]
        %v801 = vld [vmem:[%s264 + $0x764] sm:$0xf]
        %v802 = vld [vmem:[%s264 + $0x768] sm:$0xf]
        %v803 = vld [vmem:[%s264 + $0x76c] sm:$0xf]
        %v804 = vld [vmem:[%s264 + $0x770] sm:$0xf]
        %v805 = vld [vmem:[%s264 + $0x774] sm:$0xf]
        %v806 = vld [vmem:[%s264 + $0x778] sm:$0xf]
        %v807 = vld [vmem:[%s264 + $0x77c] sm:$0xf]
        %v808 = vld [vmem:[%s264 + $0x780] sm:$0xf]
        %v809 = vld [vmem:[%s264 + $0x784] sm:$0xf]
        %v810 = vld [vmem:[%s264 + $0x788] sm:$0xf]
        %v811 = vld [vmem:[%s264 + $0x78c] sm:$0xf]
        %v812 = vld [vmem:[%s264 + $0x790] sm:$0xf]
        %v813 = vld [vmem:[%s264 + $0x794] sm:$0xf]
        %v814 = vld [vmem:[%s264 + $0x798] sm:$0xf]
        %v815 = vld [vmem:[%s264 + $0x79c] sm:$0xf]
        %v816 = vld [vmem:[%s264 + $0x7a0] sm:$0xf]
        %v817 = vld [vmem:[%s264 + $0x7a4] sm:$0xf]
        %v818 = vld [vmem:[%s264 + $0x7a8] sm:$0xf]
        %v819 = vld [vmem:[%s264 + $0x7ac] sm:$0xf]
        %v820 = vld [vmem:[%s264 + $0x7b0] sm:$0xf]
        %v821 = vld [vmem:[%s264 + $0x7b4] sm:$0xf]
        %v822 = vld [vmem:[%s264 + $0x7b8] sm:$0xf]
        %v823 = vld [vmem:[%s264 + $0x7bc] sm:$0xf]
        %v824 = vld [vmem:[%s264 + $0x7c0] sm:$0xf]
        %v825 = vld [vmem:[%s264 + $0x7c4] sm:$0xf]
        %v826 = vld [vmem:[%s264 + $0x7c8] sm:$0xf]
        %v827 = vld [vmem:[%s264 + $0x7cc] sm:$0xf]
        %v828 = vld [vmem:[%s264 + $0x7d0] sm:$0xf]
        %v829 = vld [vmem:[%s264 + $0x7d4] sm:$0xf]
        %v830 = vld [vmem:[%s264 + $0x7d8] sm:$0xf]
        %v831 = vld [vmem:[%s264 + $0x7dc] sm:$0xf]
        %v832 = vld [vmem:[%s264 + $0x7e0] sm:$0xf]
        %v833 = vld [vmem:[%s264 + $0x7e4] sm:$0xf]
        %v834 = vld [vmem:[%s264 + $0x7e8] sm:$0xf]
        %v835 = vld [vmem:[%s264 + $0x7ec] sm:$0xf]
        %v836 = vld [vmem:[%s264 + $0x7f0] sm:$0xf]
        %v837 = vld [vmem:[%s264 + $0x7f4] sm:$0xf]
        %v838 = vld [vmem:[%s264 + $0x7f8] sm:$0xf]
        %v839 = vld [vmem:[%s264 + $0x7fc] sm:$0xf]
        %v840 = vld [vmem:[%s264 + $0x800] sm:$0xf]
        %v841 = vld [vmem:[%s264 + $0x804] sm:$0xf]
        %v842 = vld [vmem:[%s264 + $0x808] sm:$0xf]
        %v843 = vld [vmem:[%s264 + $0x80c] sm:$0xf]
        %v844 = vld [vmem:[%s264 + $0x810] sm:$0xf]
        %v845 = vld [vmem:[%s264 + $0x814] sm:$0xf]
        %v846 = vld [vmem:[%s264 + $0x818] sm:$0xf]
        %v847 = vld [vmem:[%s264 + $0x81c] sm:$0xf]
        %v848 = vld [vmem:[%s264 + $0x820] sm:$0xf]
        %v849 = vld [vmem:[%s264 + $0x824] sm:$0xf]
        %v850 = vld [vmem:[%s264 + $0x828] sm:$0xf]
        %v851 = vld [vmem:[%s264 + $0x82c] sm:$0xf]
        %v852 = vld [vmem:[%s264 + $0x830] sm:$0xf]
        %v853 = vld [vmem:[%s264 + $0x834] sm:$0xf]
        %v854 = vld [vmem:[%s264 + $0x838] sm:$0xf]
        %v855 = vld [vmem:[%s264 + $0x83c] sm:$0xf]
        %v856 = vld [vmem:[%s264 + $0x840] sm:$0xf]
        %v857 = vld [vmem:[%s264 + $0x844] sm:$0xf]
        %v858 = vld [vmem:[%s264 + $0x848] sm:$0xf]
        %v859 = vld [vmem:[%s264 + $0x84c] sm:$0xf]
        %v860 = vld [vmem:[%s264 + $0x850] sm:$0xf]
        %v861 = vld [vmem:[%s264 + $0x854] sm:$0xf]
        %v862 = vld [vmem:[%s264 + $0x858] sm:$0xf]
        %v863 = vld [vmem:[%s264 + $0x85c] sm:$0xf]
        %v864 = vld [vmem:[%s264 + $0x860] sm:$0xf]
        %v865 = vld [vmem:[%s264 + $0x864] sm:$0xf]
        %v866 = vld [vmem:[%s264 + $0x868] sm:$0xf]
        %v867 = vld [vmem:[%s264 + $0x86c] sm:$0xf]
        %v868 = vld [vmem:[%s264 + $0x870] sm:$0xf]
        %v869 = vld [vmem:[%s264 + $0x874] sm:$0xf]
        %v870 = vld [vmem:[%s264 + $0x878] sm:$0xf]
        %v871 = vld [vmem:[%s264 + $0x87c] sm:$0xf]
        %v872 = vld [vmem:[%s264 + $0x880] sm:$0xf]
        %v873 = vld [vmem:[%s264 + $0x884] sm:$0xf]
        %v874 = vld [vmem:[%s264 + $0x888] sm:$0xf]
        %v875 = vld [vmem:[%s264 + $0x88c] sm:$0xf]
        %v876 = vld [vmem:[%s264 + $0x890] sm:$0xf]
        %v877 = vld [vmem:[%s264 + $0x894] sm:$0xf]
        %v878 = vld [vmem:[%s264 + $0x898] sm:$0xf]
        %v879 = vld [vmem:[%s264 + $0x89c] sm:$0xf]
        %v880 = vld [vmem:[%s264 + $0x8a0] sm:$0xf]
        %v881 = vld [vmem:[%s264 + $0x8a4] sm:$0xf]
        %v882 = vld [vmem:[%s264 + $0x8a8] sm:$0xf]
        %v883 = vld [vmem:[%s264 + $0x8ac] sm:$0xf]
        %v884 = vld [vmem:[%s264 + $0x8b0] sm:$0xf]
        %v885 = vld [vmem:[%s264 + $0x8b4] sm:$0xf]
        %v886 = vld [vmem:[%s264 + $0x8b8] sm:$0xf]
        %v887 = vld [vmem:[%s264 + $0x8bc] sm:$0xf]
        %v888 = vld [vmem:[%s264 + $0x8c0] sm:$0xf]
        %v889 = vld [vmem:[%s264 + $0x8c4] sm:$0xf]
        %v890 = vld [vmem:[%s264 + $0x8c8] sm:$0xf]
        %v891 = vld [vmem:[%s264 + $0x8cc] sm:$0xf]
        %v892 = vld [vmem:[%s264 + $0x8d0] sm:$0xf]
        %v893 = vld [vmem:[%s264 + $0x8d4] sm:$0xf]
        %v894 = vld [vmem:[%s264 + $0x8d8] sm:$0xf]
        %v895 = vld [vmem:[%s264 + $0x8dc] sm:$0xf]
        %v896 = vld [vmem:[%s264 + $0x8e0] sm:$0xf]
        %v897 = vld [vmem:[%s264 + $0x8e4] sm:$0xf]
        %v898 = vld [vmem:[%s264 + $0x8e8] sm:$0xf]
        %v899 = vld [vmem:[%s264 + $0x8ec] sm:$0xf]
        %v900 = vld [vmem:[%s264 + $0x8f0] sm:$0xf]
        %v901 = vld [vmem:[%s264 + $0x8f4] sm:$0xf]
        %v902 = vld [vmem:[%s264 + $0x8f8] sm:$0xf]
        %v903 = vld [vmem:[%s264 + $0x8fc] sm:$0xf]
        %v922 = vunpack.c.l.b16 %v310
        %v923 = vunpack.c.h.b16 %v310
        %v924 = vunpack.c.l.b16 %v311
        %v925 = vunpack.c.h.b16 %v311
        %v926 = vunpack.c.l.b16 %v312
        %v927 = vunpack.c.h.b16 %v312
        %v928 = vunpack.c.l.b16 %v313
        %v929 = vunpack.c.h.b16 %v313
        %v930 = vunpack.c.l.b16 %v314
        %v931 = vunpack.c.h.b16 %v314
        %v932 = vunpack.c.l.b16 %v315
        %v933 = vunpack.c.h.b16 %v315
        %v934 = vunpack.c.l.b16 %v316
        %v935 = vunpack.c.h.b16 %v316
        %v936 = vunpack.c.l.b16 %v317
        %v937 = vunpack.c.h.b16 %v317
        %v938 = vunpack.c.l.b16 %v318
        %v939 = vunpack.c.h.b16 %v318
        %v940 = vunpack.c.l.b16 %v319
        %v941 = vunpack.c.h.b16 %v319
        %v942 = vunpack.c.l.b16 %v320
        %v943 = vunpack.c.h.b16 %v320
        %v944 = vunpack.c.l.b16 %v321
        %v945 = vunpack.c.h.b16 %v321
        %v946 = vunpack.c.l.b16 %v322
        %v947 = vunpack.c.h.b16 %v322
        %v948 = vunpack.c.l.b16 %v323
        %v949 = vunpack.c.h.b16 %v323
        %v950 = vunpack.c.l.b16 %v324
        %v951 = vunpack.c.h.b16 %v324
        %v952 = vunpack.c.l.b16 %v325
        %v953 = vunpack.c.h.b16 %v325
        %v954 = vunpack.c.l.b16 %v326
        %v955 = vunpack.c.h.b16 %v326
        %v956 = vunpack.c.l.b16 %v327
        %v957 = vunpack.c.h.b16 %v327
        %v958 = vpack.c.b16 %v922, %v922
        %v959 = vpack.c.b16 %v923, %v923
        %v960 = vpack.c.b16 %v924, %v924
        %v961 = vpack.c.b16 %v925, %v925
        %v962 = vpack.c.b16 %v926, %v926
        %v963 = vpack.c.b16 %v927, %v927
        %v964 = vpack.c.b16 %v928, %v928
        %v965 = vpack.c.b16 %v929, %v929
        %v966 = vpack.c.b16 %v930, %v930
        %v967 = vpack.c.b16 %v931, %v931
        %v968 = vpack.c.b16 %v932, %v932
        %v969 = vpack.c.b16 %v933, %v933
        %v970 = vpack.c.b16 %v934, %v934
        %v971 = vpack.c.b16 %v935, %v935
        %v972 = vpack.c.b16 %v936, %v936
        %v973 = vpack.c.b16 %v937, %v937
        %v974 = vpack.c.b16 %v938, %v938
        %v975 = vpack.c.b16 %v939, %v939
        %v976 = vpack.c.b16 %v940, %v940
        %v977 = vpack.c.b16 %v941, %v941
        %v978 = vpack.c.b16 %v942, %v942
        %v979 = vpack.c.b16 %v943, %v943
        %v980 = vpack.c.b16 %v944, %v944
        %v981 = vpack.c.b16 %v945, %v945
        %v982 = vpack.c.b16 %v946, %v946
        %v983 = vpack.c.b16 %v947, %v947
        %v984 = vpack.c.b16 %v948, %v948
        %v985 = vpack.c.b16 %v949, %v949
        %v986 = vpack.c.b16 %v950, %v950
        %v987 = vpack.c.b16 %v951, %v951
        %v988 = vpack.c.b16 %v952, %v952
        %v989 = vpack.c.b16 %v953, %v953
        %v990 = vpack.c.b16 %v954, %v954
        %v991 = vpack.c.b16 %v955, %v955
        %v992 = vpack.c.b16 %v956, %v956
        %v993 = vpack.c.b16 %v957, %v957
        %v1606 = vunpack.c.l.b16 %v328
        %v1607 = vunpack.c.l.b16 %v329
        %v1608 = vunpack.c.l.b16 %v330
        %v1609 = vunpack.c.l.b16 %v331
        %v1610 = vunpack.c.l.b16 %v332
        %v1611 = vunpack.c.l.b16 %v333
        %v1612 = vunpack.c.l.b16 %v334
        %v1613 = vunpack.c.l.b16 %v335
        %v1614 = vunpack.c.l.b16 %v336
        %v1615 = vunpack.c.l.b16 %v337
        %v1616 = vunpack.c.l.b16 %v338
        %v1617 = vunpack.c.l.b16 %v339
        %v1618 = vunpack.c.l.b16 %v340
        %v1619 = vunpack.c.l.b16 %v341
        %v1620 = vunpack.c.l.b16 %v342
        %v1621 = vunpack.c.l.b16 %v343
        %v1622 = vunpack.c.l.b16 %v344
        %v1623 = vunpack.c.l.b16 %v345
        %v1624 = vunpack.c.l.b16 %v346
        %v1625 = vunpack.c.l.b16 %v347
        %v1626 = vunpack.c.l.b16 %v348
        %v1627 = vunpack.c.l.b16 %v349
        %v1628 = vunpack.c.l.b16 %v350
        %v1629 = vunpack.c.l.b16 %v351
        %v1630 = vunpack.c.l.b16 %v352
        %v1631 = vunpack.c.l.b16 %v353
        %v1632 = vunpack.c.l.b16 %v354
        %v1633 = vunpack.c.l.b16 %v355
        %v1634 = vunpack.c.l.b16 %v356
        %v1635 = vunpack.c.l.b16 %v357
        %v1636 = vunpack.c.l.b16 %v358
        %v1637 = vunpack.c.l.b16 %v359
        %v1638 = vunpack.c.l.b16 %v360
        %v1639 = vunpack.c.l.b16 %v361
        %v1640 = vunpack.c.l.b16 %v362
        %v1641 = vunpack.c.l.b16 %v363
        %v1642 = vunpack.c.l.b16 %v364
        %v1643 = vunpack.c.l.b16 %v365
        %v1644 = vunpack.c.l.b16 %v366
        %v1645 = vunpack.c.l.b16 %v367
        %v1646 = vunpack.c.l.b16 %v368
        %v1647 = vunpack.c.l.b16 %v369
        %v1648 = vunpack.c.l.b16 %v370
        %v1649 = vunpack.c.l.b16 %v371
        %v1650 = vunpack.c.l.b16 %v372
        %v1651 = vunpack.c.l.b16 %v373
        %v1652 = vunpack.c.l.b16 %v374
        %v1653 = vunpack.c.l.b16 %v375
        %v1654 = vunpack.c.l.b16 %v376
        %v1655 = vunpack.c.l.b16 %v377
        %v1656 = vunpack.c.l.b16 %v378
        %v1657 = vunpack.c.l.b16 %v379
        %v1658 = vunpack.c.l.b16 %v380
        %v1659 = vunpack.c.l.b16 %v381
        %v1660 = vunpack.c.l.b16 %v382
        %v1661 = vunpack.c.l.b16 %v383
        %v1662 = vunpack.c.l.b16 %v384
        %v1663 = vunpack.c.l.b16 %v385
        %v1664 = vunpack.c.l.b16 %v386
        %v1665 = vunpack.c.l.b16 %v387
        %v1666 = vunpack.c.l.b16 %v388
        %v1667 = vunpack.c.l.b16 %v389
        %v1668 = vunpack.c.l.b16 %v390
        %v1669 = vunpack.c.l.b16 %v391
        %v1670 = vunpack.c.l.b16 %v392
        %v1671 = vunpack.c.l.b16 %v393
        %v1672 = vunpack.c.l.b16 %v394
        %v1673 = vunpack.c.l.b16 %v395
        %v1674 = vunpack.c.l.b16 %v396
        %v1675 = vunpack.c.l.b16 %v397
        %v1676 = vunpack.c.l.b16 %v398
        %v1677 = vunpack.c.l.b16 %v399
        %v1678 = vunpack.c.l.b16 %v400
        %v1679 = vunpack.c.l.b16 %v401
        %v1680 = vunpack.c.l.b16 %v402
        %v1681 = vunpack.c.l.b16 %v403
        %v1682 = vunpack.c.l.b16 %v404
        %v1683 = vunpack.c.l.b16 %v405
        %v1684 = vunpack.c.l.b16 %v406
        %v1685 = vunpack.c.l.b16 %v407
        %v1686 = vunpack.c.l.b16 %v408
        %v1687 = vunpack.c.l.b16 %v409
        %v1688 = vunpack.c.l.b16 %v410
        %v1689 = vunpack.c.l.b16 %v411
        %v1690 = vunpack.c.l.b16 %v412
        %v1691 = vunpack.c.l.b16 %v413
        %v1692 = vunpack.c.l.b16 %v414
        %v1693 = vunpack.c.l.b16 %v415
        %v1694 = vunpack.c.l.b16 %v416
        %v1695 = vunpack.c.l.b16 %v417
        %v1696 = vunpack.c.l.b16 %v418
        %v1697 = vunpack.c.l.b16 %v419
        %v1698 = vunpack.c.l.b16 %v420
        %v1699 = vunpack.c.l.b16 %v421
        %v1700 = vunpack.c.l.b16 %v422
        %v1701 = vunpack.c.l.b16 %v423
        %v1702 = vunpack.c.l.b16 %v424
        %v1703 = vunpack.c.l.b16 %v425
        %v1704 = vunpack.c.l.b16 %v426
        %v1705 = vunpack.c.l.b16 %v427
        %v1706 = vunpack.c.l.b16 %v428
        %v1707 = vunpack.c.l.b16 %v429
        %v1708 = vunpack.c.l.b16 %v430
        %v1709 = vunpack.c.l.b16 %v431
        %v1710 = vunpack.c.l.b16 %v432
        %v1711 = vunpack.c.l.b16 %v433
        %v1712 = vunpack.c.l.b16 %v434
        %v1713 = vunpack.c.l.b16 %v435
        %v1714 = vunpack.c.l.b16 %v436
        %v1715 = vunpack.c.l.b16 %v437
        %v1716 = vunpack.c.l.b16 %v438
        %v1717 = vunpack.c.l.b16 %v439
        %v1718 = vunpack.c.l.b16 %v440
        %v1719 = vunpack.c.l.b16 %v441
        %v1720 = vunpack.c.l.b16 %v442
        %v1721 = vunpack.c.l.b16 %v443
        %v1722 = vunpack.c.l.b16 %v444
        %v1723 = vunpack.c.l.b16 %v445
        %v1724 = vunpack.c.l.b16 %v446
        %v1725 = vunpack.c.l.b16 %v447
        %v1726 = vunpack.c.l.b16 %v448
        %v1727 = vunpack.c.l.b16 %v449
        %v1728 = vunpack.c.l.b16 %v450
        %v1729 = vunpack.c.l.b16 %v451
        %v1730 = vunpack.c.l.b16 %v452
        %v1731 = vunpack.c.l.b16 %v453
        %v1732 = vunpack.c.l.b16 %v454
        %v1733 = vunpack.c.l.b16 %v455
        %v1734 = vunpack.c.l.b16 %v456
        %v1735 = vunpack.c.l.b16 %v457
        %v1736 = vunpack.c.l.b16 %v458
        %v1737 = vunpack.c.l.b16 %v459
        %v1738 = vunpack.c.l.b16 %v460
        %v1739 = vunpack.c.l.b16 %v461
        %v1740 = vunpack.c.l.b16 %v462
        %v1741 = vunpack.c.l.b16 %v463
        %v1742 = vunpack.c.l.b16 %v464
        %v1743 = vunpack.c.l.b16 %v465
        %v1744 = vunpack.c.l.b16 %v466
        %v1745 = vunpack.c.l.b16 %v467
        %v1746 = vunpack.c.l.b16 %v468
        %v1747 = vunpack.c.l.b16 %v469
        %v1748 = vunpack.c.l.b16 %v470
        %v1749 = vunpack.c.l.b16 %v471
        %v1750 = vunpack.c.l.b16 %v472
        %v1751 = vunpack.c.l.b16 %v473
        %v1752 = vunpack.c.l.b16 %v474
        %v1753 = vunpack.c.l.b16 %v475
        %v1754 = vunpack.c.l.b16 %v476
        %v1755 = vunpack.c.l.b16 %v477
        %v1756 = vunpack.c.l.b16 %v478
        %v1757 = vunpack.c.l.b16 %v479
        %v1758 = vunpack.c.l.b16 %v480
        %v1759 = vunpack.c.l.b16 %v481
        %v1760 = vunpack.c.l.b16 %v482
        %v1761 = vunpack.c.l.b16 %v483
        %v1762 = vunpack.c.l.b16 %v484
        %v1763 = vunpack.c.l.b16 %v485
        %v1764 = vunpack.c.l.b16 %v486
        %v1765 = vunpack.c.l.b16 %v487
        %v1766 = vunpack.c.l.b16 %v488
        %v1767 = vunpack.c.l.b16 %v489
        %v1768 = vunpack.c.l.b16 %v490
        %v1769 = vunpack.c.l.b16 %v491
        %v1770 = vunpack.c.l.b16 %v492
        %v1771 = vunpack.c.l.b16 %v493
        %v1772 = vunpack.c.l.b16 %v494
        %v1773 = vunpack.c.l.b16 %v495
        %v1774 = vunpack.c.l.b16 %v496
        %v1775 = vunpack.c.l.b16 %v497
        %v1776 = vunpack.c.l.b16 %v498
        %v1777 = vunpack.c.l.b16 %v499
        %v1778 = vunpack.c.l.b16 %v500
        %v1779 = vunpack.c.l.b16 %v501
        %v1780 = vunpack.c.l.b16 %v502
        %v1781 = vunpack.c.l.b16 %v503
        %v1782 = vunpack.c.l.b16 %v504
        %v1783 = vunpack.c.l.b16 %v505
        %v1784 = vunpack.c.l.b16 %v506
        %v1785 = vunpack.c.l.b16 %v507
        %v1786 = vunpack.c.l.b16 %v508
        %v1787 = vunpack.c.l.b16 %v509
        %v1788 = vunpack.c.l.b16 %v510
        %v1789 = vunpack.c.l.b16 %v511
        %v1790 = vunpack.c.l.b16 %v512
        %v1791 = vunpack.c.l.b16 %v513
        %v1792 = vunpack.c.l.b16 %v514
        %v1793 = vunpack.c.l.b16 %v515
        %v1794 = vunpack.c.l.b16 %v516
        %v1795 = vunpack.c.l.b16 %v517
        %v1796 = vunpack.c.l.b16 %v518
        %v1797 = vunpack.c.l.b16 %v519
        %v1798 = vunpack.c.l.b16 %v520
        %v1799 = vunpack.c.l.b16 %v521
        %v1800 = vunpack.c.l.b16 %v522
        %v1801 = vunpack.c.l.b16 %v523
        %v1802 = vunpack.c.l.b16 %v524
        %v1803 = vunpack.c.l.b16 %v525
        %v1804 = vunpack.c.l.b16 %v526
        %v1805 = vunpack.c.l.b16 %v527
        %v1806 = vunpack.c.l.b16 %v528
        %v1807 = vunpack.c.l.b16 %v529
        %v1808 = vunpack.c.l.b16 %v530
        %v1809 = vunpack.c.l.b16 %v531
        %v1810 = vunpack.c.l.b16 %v532
        %v1811 = vunpack.c.l.b16 %v533
        %v1812 = vunpack.c.l.b16 %v534
        %v1813 = vunpack.c.l.b16 %v535
        %v1814 = vunpack.c.l.b16 %v536
        %v1815 = vunpack.c.l.b16 %v537
        %v1816 = vunpack.c.l.b16 %v538
        %v1817 = vunpack.c.l.b16 %v539
        %v1818 = vunpack.c.l.b16 %v540
        %v1819 = vunpack.c.l.b16 %v541
        %v1820 = vunpack.c.l.b16 %v542
        %v1821 = vunpack.c.l.b16 %v543
        %v1822 = vunpack.c.l.b16 %v544
        %v1823 = vunpack.c.l.b16 %v545
        %v1824 = vunpack.c.l.b16 %v546
        %v1825 = vunpack.c.l.b16 %v547
        %v1826 = vunpack.c.l.b16 %v548
        %v1827 = vunpack.c.l.b16 %v549
        %v1828 = vunpack.c.l.b16 %v550
        %v1829 = vunpack.c.l.b16 %v551
        %v1830 = vunpack.c.l.b16 %v552
        %v1831 = vunpack.c.l.b16 %v553
        %v1832 = vunpack.c.l.b16 %v554
        %v1833 = vunpack.c.l.b16 %v555
        %v1834 = vunpack.c.l.b16 %v556
        %v1835 = vunpack.c.l.b16 %v557
        %v1836 = vunpack.c.l.b16 %v558
        %v1837 = vunpack.c.l.b16 %v559
        %v1838 = vunpack.c.l.b16 %v560
        %v1839 = vunpack.c.l.b16 %v561
        %v1840 = vunpack.c.l.b16 %v562
        %v1841 = vunpack.c.l.b16 %v563
        %v1842 = vunpack.c.l.b16 %v564
        %v1843 = vunpack.c.l.b16 %v565
        %v1844 = vunpack.c.l.b16 %v566
        %v1845 = vunpack.c.l.b16 %v567
        %v1846 = vunpack.c.l.b16 %v568
        %v1847 = vunpack.c.l.b16 %v569
        %v1848 = vunpack.c.l.b16 %v570
        %v1849 = vunpack.c.l.b16 %v571
        %v1850 = vunpack.c.l.b16 %v572
        %v1851 = vunpack.c.l.b16 %v573
        %v1852 = vunpack.c.l.b16 %v574
        %v1853 = vunpack.c.l.b16 %v575
        %v1854 = vunpack.c.l.b16 %v576
        %v1855 = vunpack.c.l.b16 %v577
        %v1856 = vunpack.c.l.b16 %v578
        %v1857 = vunpack.c.l.b16 %v579
        %v1858 = vunpack.c.l.b16 %v580
        %v1859 = vunpack.c.l.b16 %v581
        %v1860 = vunpack.c.l.b16 %v582
        %v1861 = vunpack.c.l.b16 %v583
        %v1862 = vunpack.c.l.b16 %v584
        %v1863 = vunpack.c.l.b16 %v585
        %v1864 = vunpack.c.l.b16 %v586
        %v1865 = vunpack.c.l.b16 %v587
        %v1866 = vunpack.c.l.b16 %v588
        %v1867 = vunpack.c.l.b16 %v589
        %v1868 = vunpack.c.l.b16 %v590
        %v1869 = vunpack.c.l.b16 %v591
        %v1870 = vunpack.c.l.b16 %v592
        %v1871 = vunpack.c.l.b16 %v593
        %v1872 = vunpack.c.l.b16 %v594
        %v1873 = vunpack.c.l.b16 %v595
        %v1874 = vunpack.c.l.b16 %v596
        %v1875 = vunpack.c.l.b16 %v597
        %v1876 = vunpack.c.l.b16 %v598
        %v1877 = vunpack.c.l.b16 %v599
        %v1878 = vunpack.c.l.b16 %v600
        %v1879 = vunpack.c.l.b16 %v601
        %v1880 = vunpack.c.l.b16 %v602
        %v1881 = vunpack.c.l.b16 %v603
        %v1882 = vunpack.c.l.b16 %v604
        %v1883 = vunpack.c.l.b16 %v605
        %v1884 = vunpack.c.l.b16 %v606
        %v1885 = vunpack.c.l.b16 %v607
        %v1886 = vunpack.c.l.b16 %v608
        %v1887 = vunpack.c.l.b16 %v609
        %v1888 = vunpack.c.l.b16 %v610
        %v1889 = vunpack.c.l.b16 %v611
        %v1890 = vunpack.c.l.b16 %v612
        %v1891 = vunpack.c.l.b16 %v613
        %v1892 = vunpack.c.l.b16 %v614
        %v1893 = vunpack.c.l.b16 %v615
        %v1894 = vunpack.c.l.b16 %v616
        %v1895 = vunpack.c.l.b16 %v617
        %v1896 = vunpack.c.l.b16 %v618
        %v1897 = vunpack.c.l.b16 %v619
        %v1898 = vunpack.c.l.b16 %v620
        %v1899 = vunpack.c.l.b16 %v621
        %v1900 = vunpack.c.l.b16 %v622
        %v1901 = vunpack.c.l.b16 %v623
        %v1902 = vunpack.c.l.b16 %v624
        %v1903 = vunpack.c.l.b16 %v625
        %v1904 = vunpack.c.l.b16 %v626
        %v1905 = vunpack.c.l.b16 %v627
        %v1906 = vunpack.c.l.b16 %v628
        %v1907 = vunpack.c.l.b16 %v629
        %v1908 = vunpack.c.l.b16 %v630
        %v1909 = vunpack.c.l.b16 %v631
        %v1910 = vunpack.c.l.b16 %v632
        %v1911 = vunpack.c.l.b16 %v633
        %v1912 = vunpack.c.l.b16 %v634
        %v1913 = vunpack.c.l.b16 %v635
        %v1914 = vunpack.c.l.b16 %v636
        %v1915 = vunpack.c.l.b16 %v637
        %v1916 = vunpack.c.l.b16 %v638
        %v1917 = vunpack.c.l.b16 %v639
        %v1918 = vunpack.c.l.b16 %v640
        %v1919 = vunpack.c.l.b16 %v641
        %v1920 = vunpack.c.l.b16 %v642
        %v1921 = vunpack.c.l.b16 %v643
        %v1922 = vunpack.c.l.b16 %v644
        %v1923 = vunpack.c.l.b16 %v645
        %v1924 = vunpack.c.l.b16 %v646
        %v1925 = vunpack.c.l.b16 %v647
        %v1926 = vunpack.c.l.b16 %v648
        %v1927 = vunpack.c.l.b16 %v649
        %v1928 = vunpack.c.l.b16 %v650
        %v1929 = vunpack.c.l.b16 %v651
        %v1930 = vunpack.c.l.b16 %v652
        %v1931 = vunpack.c.l.b16 %v653
        %v1932 = vunpack.c.l.b16 %v654
        %v1933 = vunpack.c.l.b16 %v655
        %v1934 = vunpack.c.l.b16 %v656
        %v1935 = vunpack.c.l.b16 %v657
        %v1936 = vunpack.c.l.b16 %v658
        %v1937 = vunpack.c.l.b16 %v659
        %v1938 = vunpack.c.l.b16 %v660
        %v1939 = vunpack.c.l.b16 %v661
        %v1940 = vunpack.c.l.b16 %v662
        %v1941 = vunpack.c.l.b16 %v663
        %v1942 = vunpack.c.l.b16 %v664
        %v1943 = vunpack.c.l.b16 %v665
        %v1944 = vunpack.c.l.b16 %v666
        %v1945 = vunpack.c.l.b16 %v667
        %v1946 = vunpack.c.l.b16 %v668
        %v1947 = vunpack.c.l.b16 %v669
        %v1948 = vunpack.c.l.b16 %v670
        %v1949 = vunpack.c.l.b16 %v671
        %v1950 = vunpack.c.l.b16 %v672
        %v1951 = vunpack.c.l.b16 %v673
        %v1952 = vunpack.c.l.b16 %v674
        %v1953 = vunpack.c.l.b16 %v675
        %v1954 = vunpack.c.l.b16 %v676
        %v1955 = vunpack.c.l.b16 %v677
        %v1956 = vunpack.c.l.b16 %v678
        %v1957 = vunpack.c.l.b16 %v679
        %v1958 = vunpack.c.l.b16 %v680
        %v1959 = vunpack.c.l.b16 %v681
        %v1960 = vunpack.c.l.b16 %v682
        %v1961 = vunpack.c.l.b16 %v683
        %v1962 = vunpack.c.l.b16 %v684
        %v1963 = vunpack.c.l.b16 %v685
        %v1964 = vunpack.c.l.b16 %v686
        %v1965 = vunpack.c.l.b16 %v687
        %v1966 = vunpack.c.l.b16 %v688
        %v1967 = vunpack.c.l.b16 %v689
        %v1968 = vunpack.c.l.b16 %v690
        %v1969 = vunpack.c.l.b16 %v691
        %v1970 = vunpack.c.l.b16 %v692
        %v1971 = vunpack.c.l.b16 %v693
        %v1972 = vunpack.c.l.b16 %v694
        %v1973 = vunpack.c.l.b16 %v695
        %v1974 = vunpack.c.l.b16 %v696
        %v1975 = vunpack.c.l.b16 %v697
        %v1976 = vunpack.c.l.b16 %v698
        %v1977 = vunpack.c.l.b16 %v699
        %v1978 = vunpack.c.l.b16 %v700
        %v1979 = vunpack.c.l.b16 %v701
        %v1980 = vunpack.c.l.b16 %v702
        %v1981 = vunpack.c.l.b16 %v703
        %v1982 = vunpack.c.l.b16 %v704
        %v1983 = vunpack.c.l.b16 %v705
        %v1984 = vunpack.c.l.b16 %v706
        %v1985 = vunpack.c.l.b16 %v707
        %v1986 = vunpack.c.l.b16 %v708
        %v1987 = vunpack.c.l.b16 %v709
        %v1988 = vunpack.c.l.b16 %v710
        %v1989 = vunpack.c.l.b16 %v711
        %v1990 = vunpack.c.l.b16 %v712
        %v1991 = vunpack.c.l.b16 %v713
        %v1992 = vunpack.c.l.b16 %v714
        %v1993 = vunpack.c.l.b16 %v715
        %v1994 = vunpack.c.l.b16 %v716
        %v1995 = vunpack.c.l.b16 %v717
        %v1996 = vunpack.c.l.b16 %v718
        %v1997 = vunpack.c.l.b16 %v719
        %v1998 = vunpack.c.l.b16 %v720
        %v1999 = vunpack.c.l.b16 %v721
        %v2000 = vunpack.c.l.b16 %v722
        %v2001 = vunpack.c.l.b16 %v723
        %v2002 = vunpack.c.l.b16 %v724
        %v2003 = vunpack.c.l.b16 %v725
        %v2004 = vunpack.c.l.b16 %v726
        %v2005 = vunpack.c.l.b16 %v727
        %v2006 = vunpack.c.l.b16 %v728
        %v2007 = vunpack.c.l.b16 %v729
        %v2008 = vunpack.c.l.b16 %v730
        %v2009 = vunpack.c.l.b16 %v731
        %v2010 = vunpack.c.l.b16 %v732
        %v2011 = vunpack.c.l.b16 %v733
        %v2012 = vunpack.c.l.b16 %v734
        %v2013 = vunpack.c.l.b16 %v735
        %v2014 = vunpack.c.l.b16 %v736
        %v2015 = vunpack.c.l.b16 %v737
        %v2016 = vunpack.c.l.b16 %v738
        %v2017 = vunpack.c.l.b16 %v739
        %v2018 = vunpack.c.l.b16 %v740
        %v2019 = vunpack.c.l.b16 %v741
        %v2020 = vunpack.c.l.b16 %v742
        %v2021 = vunpack.c.l.b16 %v743
        %v2022 = vunpack.c.l.b16 %v744
        %v2023 = vunpack.c.l.b16 %v745
        %v2024 = vunpack.c.l.b16 %v746
        %v2025 = vunpack.c.l.b16 %v747
        %v2026 = vunpack.c.l.b16 %v748
        %v2027 = vunpack.c.l.b16 %v749
        %v2028 = vunpack.c.l.b16 %v750
        %v2029 = vunpack.c.l.b16 %v751
        %v2030 = vunpack.c.l.b16 %v752
        %v2031 = vunpack.c.l.b16 %v753
        %v2032 = vunpack.c.l.b16 %v754
        %v2033 = vunpack.c.l.b16 %v755
        %v2034 = vunpack.c.l.b16 %v756
        %v2035 = vunpack.c.l.b16 %v757
        %v2036 = vunpack.c.l.b16 %v758
        %v2037 = vunpack.c.l.b16 %v759
        %v2038 = vunpack.c.l.b16 %v760
        %v2039 = vunpack.c.l.b16 %v761
        %v2040 = vunpack.c.l.b16 %v762
        %v2041 = vunpack.c.l.b16 %v763
        %v2042 = vunpack.c.l.b16 %v764
        %v2043 = vunpack.c.l.b16 %v765
        %v2044 = vunpack.c.l.b16 %v766
        %v2045 = vunpack.c.l.b16 %v767
        %v2046 = vunpack.c.l.b16 %v768
        %v2047 = vunpack.c.l.b16 %v769
        %v2048 = vunpack.c.l.b16 %v770
        %v2049 = vunpack.c.l.b16 %v771
        %v2050 = vunpack.c.l.b16 %v772
        %v2051 = vunpack.c.l.b16 %v773
        %v2052 = vunpack.c.l.b16 %v774
        %v2053 = vunpack.c.l.b16 %v775
        %v2054 = vunpack.c.l.b16 %v776
        %v2055 = vunpack.c.l.b16 %v777
        %v2056 = vunpack.c.l.b16 %v778
        %v2057 = vunpack.c.l.b16 %v779
        %v2058 = vunpack.c.l.b16 %v780
        %v2059 = vunpack.c.l.b16 %v781
        %v2060 = vunpack.c.l.b16 %v782
        %v2061 = vunpack.c.l.b16 %v783
        %v2062 = vunpack.c.l.b16 %v784
        %v2063 = vunpack.c.l.b16 %v785
        %v2064 = vunpack.c.l.b16 %v786
        %v2065 = vunpack.c.l.b16 %v787
        %v2066 = vunpack.c.l.b16 %v788
        %v2067 = vunpack.c.l.b16 %v789
        %v2068 = vunpack.c.l.b16 %v790
        %v2069 = vunpack.c.l.b16 %v791
        %v2070 = vunpack.c.l.b16 %v792
        %v2071 = vunpack.c.l.b16 %v793
        %v2072 = vunpack.c.l.b16 %v794
        %v2073 = vunpack.c.l.b16 %v795
        %v2074 = vunpack.c.l.b16 %v796
        %v2075 = vunpack.c.l.b16 %v797
        %v2076 = vunpack.c.l.b16 %v798
        %v2077 = vunpack.c.l.b16 %v799
        %v2078 = vunpack.c.l.b16 %v800
        %v2079 = vunpack.c.l.b16 %v801
        %v2080 = vunpack.c.l.b16 %v802
        %v2081 = vunpack.c.l.b16 %v803
        %v2082 = vunpack.c.l.b16 %v804
        %v2083 = vunpack.c.l.b16 %v805
        %v2084 = vunpack.c.l.b16 %v806
        %v2085 = vunpack.c.l.b16 %v807
        %v2086 = vunpack.c.l.b16 %v808
        %v2087 = vunpack.c.l.b16 %v809
        %v2088 = vunpack.c.l.b16 %v810
        %v2089 = vunpack.c.l.b16 %v811
        %v2090 = vunpack.c.l.b16 %v812
        %v2091 = vunpack.c.l.b16 %v813
        %v2092 = vunpack.c.l.b16 %v814
        %v2093 = vunpack.c.l.b16 %v815
        %v2094 = vunpack.c.l.b16 %v816
        %v2095 = vunpack.c.l.b16 %v817
        %v2096 = vunpack.c.l.b16 %v818
        %v2097 = vunpack.c.l.b16 %v819
        %v2098 = vunpack.c.l.b16 %v820
        %v2099 = vunpack.c.l.b16 %v821
        %v2100 = vunpack.c.l.b16 %v822
        %v2101 = vunpack.c.l.b16 %v823
        %v2102 = vunpack.c.l.b16 %v824
        %v2103 = vunpack.c.l.b16 %v825
        %v2104 = vunpack.c.l.b16 %v826
        %v2105 = vunpack.c.l.b16 %v827
        %v2106 = vunpack.c.l.b16 %v828
        %v2107 = vunpack.c.l.b16 %v829
        %v2108 = vunpack.c.l.b16 %v830
        %v2109 = vunpack.c.l.b16 %v831
        %v2110 = vunpack.c.l.b16 %v832
        %v2111 = vunpack.c.l.b16 %v833
        %v2112 = vunpack.c.l.b16 %v834
        %v2113 = vunpack.c.l.b16 %v835
        %v2114 = vunpack.c.l.b16 %v836
        %v2115 = vunpack.c.l.b16 %v837
        %v2116 = vunpack.c.l.b16 %v838
        %v2117 = vunpack.c.l.b16 %v839
        %v2118 = vunpack.c.l.b16 %v840
        %v2119 = vunpack.c.l.b16 %v841
        %v2120 = vunpack.c.l.b16 %v842
        %v2121 = vunpack.c.l.b16 %v843
        %v2122 = vunpack.c.l.b16 %v844
        %v2123 = vunpack.c.l.b16 %v845
        %v2124 = vunpack.c.l.b16 %v846
        %v2125 = vunpack.c.l.b16 %v847
        %v2126 = vunpack.c.l.b16 %v848
        %v2127 = vunpack.c.l.b16 %v849
        %v2128 = vunpack.c.l.b16 %v850
        %v2129 = vunpack.c.l.b16 %v851
        %v2130 = vunpack.c.l.b16 %v852
        %v2131 = vunpack.c.l.b16 %v853
        %v2132 = vunpack.c.l.b16 %v854
        %v2133 = vunpack.c.l.b16 %v855
        %v2134 = vunpack.c.l.b16 %v856
        %v2135 = vunpack.c.l.b16 %v857
        %v2136 = vunpack.c.l.b16 %v858
        %v2137 = vunpack.c.l.b16 %v859
        %v2138 = vunpack.c.l.b16 %v860
        %v2139 = vunpack.c.l.b16 %v861
        %v2140 = vunpack.c.l.b16 %v862
        %v2141 = vunpack.c.l.b16 %v863
        %v2142 = vunpack.c.l.b16 %v864
        %v2143 = vunpack.c.l.b16 %v865
        %v2144 = vunpack.c.l.b16 %v866
        %v2145 = vunpack.c.l.b16 %v867
        %v2146 = vunpack.c.l.b16 %v868
        %v2147 = vunpack.c.l.b16 %v869
        %v2148 = vunpack.c.l.b16 %v870
        %v2149 = vunpack.c.l.b16 %v871
        %v2150 = vunpack.c.l.b16 %v872
        %v2151 = vunpack.c.l.b16 %v873
        %v2152 = vunpack.c.l.b16 %v874
        %v2153 = vunpack.c.l.b16 %v875
        %v2154 = vunpack.c.l.b16 %v876
        %v2155 = vunpack.c.l.b16 %v877
        %v2156 = vunpack.c.l.b16 %v878
        %v2157 = vunpack.c.l.b16 %v879
        %v2158 = vunpack.c.l.b16 %v880
        %v2159 = vunpack.c.l.b16 %v881
        %v2160 = vunpack.c.l.b16 %v882
        %v2161 = vunpack.c.l.b16 %v883
        %v2162 = vunpack.c.l.b16 %v884
        %v2163 = vunpack.c.l.b16 %v885
        %v2164 = vunpack.c.l.b16 %v886
        %v2165 = vunpack.c.l.b16 %v887
        %v2166 = vunpack.c.l.b16 %v888
        %v2167 = vunpack.c.l.b16 %v889
        %v2168 = vunpack.c.l.b16 %v890
        %v2169 = vunpack.c.l.b16 %v891
        %v2170 = vunpack.c.l.b16 %v892
        %v2171 = vunpack.c.l.b16 %v893
        %v2172 = vunpack.c.l.b16 %v894
        %v2173 = vunpack.c.l.b16 %v895
        %v2174 = vunpack.c.l.b16 %v896
        %v2175 = vunpack.c.l.b16 %v897
        %v2176 = vunpack.c.l.b16 %v898
        %v2177 = vunpack.c.l.b16 %v899
        %v2178 = vunpack.c.l.b16 %v900
        %v2179 = vunpack.c.l.b16 %v901
        %v2180 = vunpack.c.l.b16 %v902
        %v2181 = vunpack.c.l.b16 %v903
        %v2182 = vpack.c.b16 %v1607, %v1606
        %v2183 = vpack.c.b16 %v1609, %v1608
        %v2184 = vpack.c.b16 %v1611, %v1610
        %v2185 = vpack.c.b16 %v1613, %v1612
        %v2186 = vpack.c.b16 %v1615, %v1614
        %v2187 = vpack.c.b16 %v1617, %v1616
        %v2188 = vpack.c.b16 %v1619, %v1618
        %v2189 = vpack.c.b16 %v1621, %v1620
        %v2190 = vpack.c.b16 %v1623, %v1622
        %v2191 = vpack.c.b16 %v1625, %v1624
        %v2192 = vpack.c.b16 %v1627, %v1626
        %v2193 = vpack.c.b16 %v1629, %v1628
        %v2194 = vpack.c.b16 %v1631, %v1630
        %v2195 = vpack.c.b16 %v1633, %v1632
        %v2196 = vpack.c.b16 %v1635, %v1634
        %v2197 = vpack.c.b16 %v1637, %v1636
        %v2198 = vpack.c.b16 %v1639, %v1638
        %v2199 = vpack.c.b16 %v1641, %v1640
        %v2200 = vpack.c.b16 %v1643, %v1642
        %v2201 = vpack.c.b16 %v1645, %v1644
        %v2202 = vpack.c.b16 %v1647, %v1646
        %v2203 = vpack.c.b16 %v1649, %v1648
        %v2204 = vpack.c.b16 %v1651, %v1650
        %v2205 = vpack.c.b16 %v1653, %v1652
        %v2206 = vpack.c.b16 %v1655, %v1654
        %v2207 = vpack.c.b16 %v1657, %v1656
        %v2208 = vpack.c.b16 %v1659, %v1658
        %v2209 = vpack.c.b16 %v1661, %v1660
        %v2210 = vpack.c.b16 %v1663, %v1662
        %v2211 = vpack.c.b16 %v1665, %v1664
        %v2212 = vpack.c.b16 %v1667, %v1666
        %v2213 = vpack.c.b16 %v1669, %v1668
        %v2214 = vpack.c.b16 %v1671, %v1670
        %v2215 = vpack.c.b16 %v1673, %v1672
        %v2216 = vpack.c.b16 %v1675, %v1674
        %v2217 = vpack.c.b16 %v1677, %v1676
        %v2218 = vpack.c.b16 %v1679, %v1678
        %v2219 = vpack.c.b16 %v1681, %v1680
        %v2220 = vpack.c.b16 %v1683, %v1682
        %v2221 = vpack.c.b16 %v1685, %v1684
        %v2222 = vpack.c.b16 %v1687, %v1686
        %v2223 = vpack.c.b16 %v1689, %v1688
        %v2224 = vpack.c.b16 %v1691, %v1690
        %v2225 = vpack.c.b16 %v1693, %v1692
        %v2226 = vpack.c.b16 %v1695, %v1694
        %v2227 = vpack.c.b16 %v1697, %v1696
        %v2228 = vpack.c.b16 %v1699, %v1698
        %v2229 = vpack.c.b16 %v1701, %v1700
        %v2230 = vpack.c.b16 %v1703, %v1702
        %v2231 = vpack.c.b16 %v1705, %v1704
        %v2232 = vpack.c.b16 %v1707, %v1706
        %v2233 = vpack.c.b16 %v1709, %v1708
        %v2234 = vpack.c.b16 %v1711, %v1710
        %v2235 = vpack.c.b16 %v1713, %v1712
        %v2236 = vpack.c.b16 %v1715, %v1714
        %v2237 = vpack.c.b16 %v1717, %v1716
        %v2238 = vpack.c.b16 %v1719, %v1718
        %v2239 = vpack.c.b16 %v1721, %v1720
        %v2240 = vpack.c.b16 %v1723, %v1722
        %v2241 = vpack.c.b16 %v1725, %v1724
        %v2242 = vpack.c.b16 %v1727, %v1726
        %v2243 = vpack.c.b16 %v1729, %v1728
        %v2244 = vpack.c.b16 %v1731, %v1730
        %v2245 = vpack.c.b16 %v1733, %v1732
        %v2246 = vpack.c.b16 %v1735, %v1734
        %v2247 = vpack.c.b16 %v1737, %v1736
        %v2248 = vpack.c.b16 %v1739, %v1738
        %v2249 = vpack.c.b16 %v1741, %v1740
        %v2250 = vpack.c.b16 %v1743, %v1742
        %v2251 = vpack.c.b16 %v1745, %v1744
        %v2252 = vpack.c.b16 %v1747, %v1746
        %v2253 = vpack.c.b16 %v1749, %v1748
        %v2254 = vpack.c.b16 %v1751, %v1750
        %v2255 = vpack.c.b16 %v1753, %v1752
        %v2256 = vpack.c.b16 %v1755, %v1754
        %v2257 = vpack.c.b16 %v1757, %v1756
        %v2258 = vpack.c.b16 %v1759, %v1758
        %v2259 = vpack.c.b16 %v1761, %v1760
        %v2260 = vpack.c.b16 %v1763, %v1762
        %v2261 = vpack.c.b16 %v1765, %v1764
        %v2262 = vpack.c.b16 %v1767, %v1766
        %v2263 = vpack.c.b16 %v1769, %v1768
        %v2264 = vpack.c.b16 %v1771, %v1770
        %v2265 = vpack.c.b16 %v1773, %v1772
        %v2266 = vpack.c.b16 %v1775, %v1774
        %v2267 = vpack.c.b16 %v1777, %v1776
        %v2268 = vpack.c.b16 %v1779, %v1778
        %v2269 = vpack.c.b16 %v1781, %v1780
        %v2270 = vpack.c.b16 %v1783, %v1782
        %v2271 = vpack.c.b16 %v1785, %v1784
        %v2272 = vpack.c.b16 %v1787, %v1786
        %v2273 = vpack.c.b16 %v1789, %v1788
        %v2274 = vpack.c.b16 %v1791, %v1790
        %v2275 = vpack.c.b16 %v1793, %v1792
        %v2276 = vpack.c.b16 %v1795, %v1794
        %v2277 = vpack.c.b16 %v1797, %v1796
        %v2278 = vpack.c.b16 %v1799, %v1798
        %v2279 = vpack.c.b16 %v1801, %v1800
        %v2280 = vpack.c.b16 %v1803, %v1802
        %v2281 = vpack.c.b16 %v1805, %v1804
        %v2282 = vpack.c.b16 %v1807, %v1806
        %v2283 = vpack.c.b16 %v1809, %v1808
        %v2284 = vpack.c.b16 %v1811, %v1810
        %v2285 = vpack.c.b16 %v1813, %v1812
        %v2286 = vpack.c.b16 %v1815, %v1814
        %v2287 = vpack.c.b16 %v1817, %v1816
        %v2288 = vpack.c.b16 %v1819, %v1818
        %v2289 = vpack.c.b16 %v1821, %v1820
        %v2290 = vpack.c.b16 %v1823, %v1822
        %v2291 = vpack.c.b16 %v1825, %v1824
        %v2292 = vpack.c.b16 %v1827, %v1826
        %v2293 = vpack.c.b16 %v1829, %v1828
        %v2294 = vpack.c.b16 %v1831, %v1830
        %v2295 = vpack.c.b16 %v1833, %v1832
        %v2296 = vpack.c.b16 %v1835, %v1834
        %v2297 = vpack.c.b16 %v1837, %v1836
        %v2298 = vpack.c.b16 %v1839, %v1838
        %v2299 = vpack.c.b16 %v1841, %v1840
        %v2300 = vpack.c.b16 %v1843, %v1842
        %v2301 = vpack.c.b16 %v1845, %v1844
        %v2302 = vpack.c.b16 %v1847, %v1846
        %v2303 = vpack.c.b16 %v1849, %v1848
        %v2304 = vpack.c.b16 %v1851, %v1850
        %v2305 = vpack.c.b16 %v1853, %v1852
        %v2306 = vpack.c.b16 %v1855, %v1854
        %v2307 = vpack.c.b16 %v1857, %v1856
        %v2308 = vpack.c.b16 %v1859, %v1858
        %v2309 = vpack.c.b16 %v1861, %v1860
        %v2310 = vpack.c.b16 %v1863, %v1862
        %v2311 = vpack.c.b16 %v1865, %v1864
        %v2312 = vpack.c.b16 %v1867, %v1866
        %v2313 = vpack.c.b16 %v1869, %v1868
        %v2314 = vpack.c.b16 %v1871, %v1870
        %v2315 = vpack.c.b16 %v1873, %v1872
        %v2316 = vpack.c.b16 %v1875, %v1874
        %v2317 = vpack.c.b16 %v1877, %v1876
        %v2318 = vpack.c.b16 %v1879, %v1878
        %v2319 = vpack.c.b16 %v1881, %v1880
        %v2320 = vpack.c.b16 %v1883, %v1882
        %v2321 = vpack.c.b16 %v1885, %v1884
        %v2322 = vpack.c.b16 %v1887, %v1886
        %v2323 = vpack.c.b16 %v1889, %v1888
        %v2324 = vpack.c.b16 %v1891, %v1890
        %v2325 = vpack.c.b16 %v1893, %v1892
        %v2326 = vpack.c.b16 %v1895, %v1894
        %v2327 = vpack.c.b16 %v1897, %v1896
        %v2328 = vpack.c.b16 %v1899, %v1898
        %v2329 = vpack.c.b16 %v1901, %v1900
        %v2330 = vpack.c.b16 %v1903, %v1902
        %v2331 = vpack.c.b16 %v1905, %v1904
        %v2332 = vpack.c.b16 %v1907, %v1906
        %v2333 = vpack.c.b16 %v1909, %v1908
        %v2334 = vpack.c.b16 %v1911, %v1910
        %v2335 = vpack.c.b16 %v1913, %v1912
        %v2336 = vpack.c.b16 %v1915, %v1914
        %v2337 = vpack.c.b16 %v1917, %v1916
        %v2338 = vpack.c.b16 %v1919, %v1918
        %v2339 = vpack.c.b16 %v1921, %v1920
        %v2340 = vpack.c.b16 %v1923, %v1922
        %v2341 = vpack.c.b16 %v1925, %v1924
        %v2342 = vpack.c.b16 %v1927, %v1926
        %v2343 = vpack.c.b16 %v1929, %v1928
        %v2344 = vpack.c.b16 %v1931, %v1930
        %v2345 = vpack.c.b16 %v1933, %v1932
        %v2346 = vpack.c.b16 %v1935, %v1934
        %v2347 = vpack.c.b16 %v1937, %v1936
        %v2348 = vpack.c.b16 %v1939, %v1938
        %v2349 = vpack.c.b16 %v1941, %v1940
        %v2350 = vpack.c.b16 %v1943, %v1942
        %v2351 = vpack.c.b16 %v1945, %v1944
        %v2352 = vpack.c.b16 %v1947, %v1946
        %v2353 = vpack.c.b16 %v1949, %v1948
        %v2354 = vpack.c.b16 %v1951, %v1950
        %v2355 = vpack.c.b16 %v1953, %v1952
        %v2356 = vpack.c.b16 %v1955, %v1954
        %v2357 = vpack.c.b16 %v1957, %v1956
        %v2358 = vpack.c.b16 %v1959, %v1958
        %v2359 = vpack.c.b16 %v1961, %v1960
        %v2360 = vpack.c.b16 %v1963, %v1962
        %v2361 = vpack.c.b16 %v1965, %v1964
        %v2362 = vpack.c.b16 %v1967, %v1966
        %v2363 = vpack.c.b16 %v1969, %v1968
        %v2364 = vpack.c.b16 %v1971, %v1970
        %v2365 = vpack.c.b16 %v1973, %v1972
        %v2366 = vpack.c.b16 %v1975, %v1974
        %v2367 = vpack.c.b16 %v1977, %v1976
        %v2368 = vpack.c.b16 %v1979, %v1978
        %v2369 = vpack.c.b16 %v1981, %v1980
        %v2370 = vpack.c.b16 %v1983, %v1982
        %v2371 = vpack.c.b16 %v1985, %v1984
        %v2372 = vpack.c.b16 %v1987, %v1986
        %v2373 = vpack.c.b16 %v1989, %v1988
        %v2374 = vpack.c.b16 %v1991, %v1990
        %v2375 = vpack.c.b16 %v1993, %v1992
        %v2376 = vpack.c.b16 %v1995, %v1994
        %v2377 = vpack.c.b16 %v1997, %v1996
        %v2378 = vpack.c.b16 %v1999, %v1998
        %v2379 = vpack.c.b16 %v2001, %v2000
        %v2380 = vpack.c.b16 %v2003, %v2002
        %v2381 = vpack.c.b16 %v2005, %v2004
        %v2382 = vpack.c.b16 %v2007, %v2006
        %v2383 = vpack.c.b16 %v2009, %v2008
        %v2384 = vpack.c.b16 %v2011, %v2010
        %v2385 = vpack.c.b16 %v2013, %v2012
        %v2386 = vpack.c.b16 %v2015, %v2014
        %v2387 = vpack.c.b16 %v2017, %v2016
        %v2388 = vpack.c.b16 %v2019, %v2018
        %v2389 = vpack.c.b16 %v2021, %v2020
        %v2390 = vpack.c.b16 %v2023, %v2022
        %v2391 = vpack.c.b16 %v2025, %v2024
        %v2392 = vpack.c.b16 %v2027, %v2026
        %v2393 = vpack.c.b16 %v2029, %v2028
        %v2394 = vpack.c.b16 %v2031, %v2030
        %v2395 = vpack.c.b16 %v2033, %v2032
        %v2396 = vpack.c.b16 %v2035, %v2034
        %v2397 = vpack.c.b16 %v2037, %v2036
        %v2398 = vpack.c.b16 %v2039, %v2038
        %v2399 = vpack.c.b16 %v2041, %v2040
        %v2400 = vpack.c.b16 %v2043, %v2042
        %v2401 = vpack.c.b16 %v2045, %v2044
        %v2402 = vpack.c.b16 %v2047, %v2046
        %v2403 = vpack.c.b16 %v2049, %v2048
        %v2404 = vpack.c.b16 %v2051, %v2050
        %v2405 = vpack.c.b16 %v2053, %v2052
        %v2406 = vpack.c.b16 %v2055, %v2054
        %v2407 = vpack.c.b16 %v2057, %v2056
        %v2408 = vpack.c.b16 %v2059, %v2058
        %v2409 = vpack.c.b16 %v2061, %v2060
        %v2410 = vpack.c.b16 %v2063, %v2062
        %v2411 = vpack.c.b16 %v2065, %v2064
        %v2412 = vpack.c.b16 %v2067, %v2066
        %v2413 = vpack.c.b16 %v2069, %v2068
        %v2414 = vpack.c.b16 %v2071, %v2070
        %v2415 = vpack.c.b16 %v2073, %v2072
        %v2416 = vpack.c.b16 %v2075, %v2074
        %v2417 = vpack.c.b16 %v2077, %v2076
        %v2418 = vpack.c.b16 %v2079, %v2078
        %v2419 = vpack.c.b16 %v2081, %v2080
        %v2420 = vpack.c.b16 %v2083, %v2082
        %v2421 = vpack.c.b16 %v2085, %v2084
        %v2422 = vpack.c.b16 %v2087, %v2086
        %v2423 = vpack.c.b16 %v2089, %v2088
        %v2424 = vpack.c.b16 %v2091, %v2090
        %v2425 = vpack.c.b16 %v2093, %v2092
        %v2426 = vpack.c.b16 %v2095, %v2094
        %v2427 = vpack.c.b16 %v2097, %v2096
        %v2428 = vpack.c.b16 %v2099, %v2098
        %v2429 = vpack.c.b16 %v2101, %v2100
        %v2430 = vpack.c.b16 %v2103, %v2102
        %v2431 = vpack.c.b16 %v2105, %v2104
        %v2432 = vpack.c.b16 %v2107, %v2106
        %v2433 = vpack.c.b16 %v2109, %v2108
        %v2434 = vpack.c.b16 %v2111, %v2110
        %v2435 = vpack.c.b16 %v2113, %v2112
        %v2436 = vpack.c.b16 %v2115, %v2114
        %v2437 = vpack.c.b16 %v2117, %v2116
        %v2438 = vpack.c.b16 %v2119, %v2118
        %v2439 = vpack.c.b16 %v2121, %v2120
        %v2440 = vpack.c.b16 %v2123, %v2122
        %v2441 = vpack.c.b16 %v2125, %v2124
        %v2442 = vpack.c.b16 %v2127, %v2126
        %v2443 = vpack.c.b16 %v2129, %v2128
        %v2444 = vpack.c.b16 %v2131, %v2130
        %v2445 = vpack.c.b16 %v2133, %v2132
        %v2446 = vpack.c.b16 %v2135, %v2134
        %v2447 = vpack.c.b16 %v2137, %v2136
        %v2448 = vpack.c.b16 %v2139, %v2138
        %v2449 = vpack.c.b16 %v2141, %v2140
        %v2450 = vpack.c.b16 %v2143, %v2142
        %v2451 = vpack.c.b16 %v2145, %v2144
        %v2452 = vpack.c.b16 %v2147, %v2146
        %v2453 = vpack.c.b16 %v2149, %v2148
        %v2454 = vpack.c.b16 %v2151, %v2150
        %v2455 = vpack.c.b16 %v2153, %v2152
        %v2456 = vpack.c.b16 %v2155, %v2154
        %v2457 = vpack.c.b16 %v2157, %v2156
        %v2458 = vpack.c.b16 %v2159, %v2158
        %v2459 = vpack.c.b16 %v2161, %v2160
        %v2460 = vpack.c.b16 %v2163, %v2162
        %v2461 = vpack.c.b16 %v2165, %v2164
        %v2462 = vpack.c.b16 %v2167, %v2166
        %v2463 = vpack.c.b16 %v2169, %v2168
        %v2464 = vpack.c.b16 %v2171, %v2170
        %v2465 = vpack.c.b16 %v2173, %v2172
        %v2466 = vpack.c.b16 %v2175, %v2174
        %v2467 = vpack.c.b16 %v2177, %v2176
        %v2468 = vpack.c.b16 %v2179, %v2178
        %v2469 = vpack.c.b16 %v2181, %v2180
        %2758 = vmatpush.bf16.msra.mxu0 %v2189
        %2759 = vmatpush.bf16.msra.mxu0 %v2188
        %2760 = vmatpush.bf16.msra.mxu0 %v2187
        %2761 = vmatpush.bf16.msra.mxu0 %v2186
        %2762 = vmatpush.bf16.msra.mxu0 %v2185
        %2763 = vmatpush.bf16.msra.mxu0 %v2184
        %2764 = vmatpush.bf16.msra.mxu0 %v2183
        %2765 = vmatpush.bf16.msra.mxu0 %v2182
        %2766 = vmatmul.bf16.gmra.mxu0 %v958
        %v2767 = vpop.f32.mrf.mxu0
        %v2768 = vadd.f32 0.0, %v2767
        %v2769 = vpop.f32.mrf.mxu0
        %2770 = vdwg.mxu0
        %2771 = vmatpush.bf16.msra.mxu0 %v2197
        %2772 = vmatpush.bf16.msra.mxu0 %v2196
        %2773 = vmatpush.bf16.msra.mxu0 %v2195
        %2774 = vmatpush.bf16.msra.mxu0 %v2194
        %2775 = vmatpush.bf16.msra.mxu0 %v2193
        %2776 = vmatpush.bf16.msra.mxu0 %v2192
        %2777 = vmatpush.bf16.msra.mxu0 %v2191
        %2778 = vmatpush.bf16.msra.mxu0 %v2190
        %2779 = vmatmul.bf16.gmra.mxu0 %v959
        %v2780 = vpop.f32.mrf.mxu0
        %v2781 = vadd.f32 %v2768, %v2780
        %v2782 = vpop.f32.mrf.mxu0
        %2783 = vdwg.mxu0
        %2784 = vmatpush.bf16.msra.mxu0 %v2205
        %2785 = vmatpush.bf16.msra.mxu0 %v2204
        %2786 = vmatpush.bf16.msra.mxu0 %v2203
        %2787 = vmatpush.bf16.msra.mxu0 %v2202
        %2788 = vmatpush.bf16.msra.mxu0 %v2201
        %2789 = vmatpush.bf16.msra.mxu0 %v2200
        %2790 = vmatpush.bf16.msra.mxu0 %v2199
        %2791 = vmatpush.bf16.msra.mxu0 %v2198
        %2792 = vmatmul.bf16.gmra.mxu0 %v960
        %v2793 = vpop.f32.mrf.mxu0
        %v2794 = vadd.f32 %v2781, %v2793
        %v2795 = vpop.f32.mrf.mxu0
        %2796 = vdwg.mxu0
        %2797 = vmatpush.bf16.msra.mxu0 %v2213
        %2798 = vmatpush.bf16.msra.mxu0 %v2212
        %2799 = vmatpush.bf16.msra.mxu0 %v2211
        %2800 = vmatpush.bf16.msra.mxu0 %v2210
        %2801 = vmatpush.bf16.msra.mxu0 %v2209
        %2802 = vmatpush.bf16.msra.mxu0 %v2208
        %2803 = vmatpush.bf16.msra.mxu0 %v2207
        %2804 = vmatpush.bf16.msra.mxu0 %v2206
        %2805 = vmatmul.bf16.gmra.mxu0 %v961
        %v2806 = vpop.f32.mrf.mxu0
        %v2807 = vadd.f32 %v2794, %v2806
        %v2808 = vpop.f32.mrf.mxu0
        %2809 = vdwg.mxu0
        %2810 = vmatpush.bf16.msra.mxu0 %v2221
        %2811 = vmatpush.bf16.msra.mxu0 %v2220
        %2812 = vmatpush.bf16.msra.mxu0 %v2219
        %2813 = vmatpush.bf16.msra.mxu0 %v2218
        %2814 = vmatpush.bf16.msra.mxu0 %v2217
        %2815 = vmatpush.bf16.msra.mxu0 %v2216
        %2816 = vmatpush.bf16.msra.mxu0 %v2215
        %2817 = vmatpush.bf16.msra.mxu0 %v2214
        %2818 = vmatmul.bf16.gmra.mxu0 %v962
        %v2819 = vpop.f32.mrf.mxu0
        %v2820 = vadd.f32 %v2807, %v2819
        %v2821 = vpop.f32.mrf.mxu0
        %2822 = vdwg.mxu0
        %2823 = vmatpush.bf16.msra.mxu0 %v2229
        %2824 = vmatpush.bf16.msra.mxu0 %v2228
        %2825 = vmatpush.bf16.msra.mxu0 %v2227
        %2826 = vmatpush.bf16.msra.mxu0 %v2226
        %2827 = vmatpush.bf16.msra.mxu0 %v2225
        %2828 = vmatpush.bf16.msra.mxu0 %v2224
        %2829 = vmatpush.bf16.msra.mxu0 %v2223
        %2830 = vmatpush.bf16.msra.mxu0 %v2222
        %2831 = vmatmul.bf16.gmra.mxu0 %v963
        %v2832 = vpop.f32.mrf.mxu0
        %v2833 = vadd.f32 %v2820, %v2832
        %v2834 = vpop.f32.mrf.mxu0
        %2835 = vdwg.mxu0
        %2836 = vmatpush.bf16.msra.mxu0 %v2237
        %2837 = vmatpush.bf16.msra.mxu0 %v2236
        %2838 = vmatpush.bf16.msra.mxu0 %v2235
        %2839 = vmatpush.bf16.msra.mxu0 %v2234
        %2840 = vmatpush.bf16.msra.mxu0 %v2233
        %2841 = vmatpush.bf16.msra.mxu0 %v2232
        %2842 = vmatpush.bf16.msra.mxu0 %v2231
        %2843 = vmatpush.bf16.msra.mxu0 %v2230
        %2844 = vmatmul.bf16.gmra.mxu0 %v964
        %v2845 = vpop.f32.mrf.mxu0
        %v2846 = vadd.f32 %v2833, %v2845
        %v2847 = vpop.f32.mrf.mxu0
        %2848 = vdwg.mxu0
        %2849 = vmatpush.bf16.msra.mxu0 %v2245
        %2850 = vmatpush.bf16.msra.mxu0 %v2244
        %2851 = vmatpush.bf16.msra.mxu0 %v2243
        %2852 = vmatpush.bf16.msra.mxu0 %v2242
        %2853 = vmatpush.bf16.msra.mxu0 %v2241
        %2854 = vmatpush.bf16.msra.mxu0 %v2240
        %2855 = vmatpush.bf16.msra.mxu0 %v2239
        %2856 = vmatpush.bf16.msra.mxu0 %v2238
        %2857 = vmatmul.bf16.gmra.mxu0 %v965
        %v2858 = vpop.f32.mrf.mxu0
        %v2859 = vadd.f32 %v2846, %v2858
        %v2860 = vpop.f32.mrf.mxu0
        %2861 = vdwg.mxu0
        %2862 = vmatpush.bf16.msra.mxu0 %v2253
        %2863 = vmatpush.bf16.msra.mxu0 %v2252
        %2864 = vmatpush.bf16.msra.mxu0 %v2251
        %2865 = vmatpush.bf16.msra.mxu0 %v2250
        %2866 = vmatpush.bf16.msra.mxu0 %v2249
        %2867 = vmatpush.bf16.msra.mxu0 %v2248
        %2868 = vmatpush.bf16.msra.mxu0 %v2247
        %2869 = vmatpush.bf16.msra.mxu0 %v2246
        %2870 = vmatmul.bf16.gmra.mxu0 %v966
        %v2871 = vpop.f32.mrf.mxu0
        %v2872 = vadd.f32 %v2859, %v2871
        %v2873 = vpop.f32.mrf.mxu0
        %2874 = vdwg.mxu0
        %2875 = vmatpush.bf16.msra.mxu0 %v2261
        %2876 = vmatpush.bf16.msra.mxu0 %v2260
        %2877 = vmatpush.bf16.msra.mxu0 %v2259
        %2878 = vmatpush.bf16.msra.mxu0 %v2258
        %2879 = vmatpush.bf16.msra.mxu0 %v2257
        %2880 = vmatpush.bf16.msra.mxu0 %v2256
        %2881 = vmatpush.bf16.msra.mxu0 %v2255
        %2882 = vmatpush.bf16.msra.mxu0 %v2254
        %2883 = vmatmul.bf16.gmra.mxu0 %v967
        %v2884 = vpop.f32.mrf.mxu0
        %v2885 = vadd.f32 %v2872, %v2884
        %v2886 = vpop.f32.mrf.mxu0
        %2887 = vdwg.mxu0
        %2888 = vmatpush.bf16.msra.mxu0 %v2269
        %2889 = vmatpush.bf16.msra.mxu0 %v2268
        %2890 = vmatpush.bf16.msra.mxu0 %v2267
        %2891 = vmatpush.bf16.msra.mxu0 %v2266
        %2892 = vmatpush.bf16.msra.mxu0 %v2265
        %2893 = vmatpush.bf16.msra.mxu0 %v2264
        %2894 = vmatpush.bf16.msra.mxu0 %v2263
        %2895 = vmatpush.bf16.msra.mxu0 %v2262
        %2896 = vmatmul.bf16.gmra.mxu0 %v968
        %v2897 = vpop.f32.mrf.mxu0
        %v2898 = vadd.f32 %v2885, %v2897
        %v2899 = vpop.f32.mrf.mxu0
        %2900 = vdwg.mxu0
        %2901 = vmatpush.bf16.msra.mxu0 %v2277
        %2902 = vmatpush.bf16.msra.mxu0 %v2276
        %2903 = vmatpush.bf16.msra.mxu0 %v2275
        %2904 = vmatpush.bf16.msra.mxu0 %v2274
        %2905 = vmatpush.bf16.msra.mxu0 %v2273
        %2906 = vmatpush.bf16.msra.mxu0 %v2272
        %2907 = vmatpush.bf16.msra.mxu0 %v2271
        %2908 = vmatpush.bf16.msra.mxu0 %v2270
        %2909 = vmatmul.bf16.gmra.mxu0 %v969
        %v2910 = vpop.f32.mrf.mxu0
        %v2911 = vadd.f32 %v2898, %v2910
        %v2912 = vpop.f32.mrf.mxu0
        %2913 = vdwg.mxu0
        %2914 = vmatpush.bf16.msra.mxu0 %v2285
        %2915 = vmatpush.bf16.msra.mxu0 %v2284
        %2916 = vmatpush.bf16.msra.mxu0 %v2283
        %2917 = vmatpush.bf16.msra.mxu0 %v2282
        %2918 = vmatpush.bf16.msra.mxu0 %v2281
        %2919 = vmatpush.bf16.msra.mxu0 %v2280
        %2920 = vmatpush.bf16.msra.mxu0 %v2279
        %2921 = vmatpush.bf16.msra.mxu0 %v2278
        %2922 = vmatmul.bf16.gmra.mxu0 %v970
        %v2923 = vpop.f32.mrf.mxu0
        %v2924 = vadd.f32 %v2911, %v2923
        %v2925 = vpop.f32.mrf.mxu0
        %2926 = vdwg.mxu0
        %2927 = vmatpush.bf16.msra.mxu0 %v2293
        %2928 = vmatpush.bf16.msra.mxu0 %v2292
        %2929 = vmatpush.bf16.msra.mxu0 %v2291
        %2930 = vmatpush.bf16.msra.mxu0 %v2290
        %2931 = vmatpush.bf16.msra.mxu0 %v2289
        %2932 = vmatpush.bf16.msra.mxu0 %v2288
        %2933 = vmatpush.bf16.msra.mxu0 %v2287
        %2934 = vmatpush.bf16.msra.mxu0 %v2286
        %2935 = vmatmul.bf16.gmra.mxu0 %v971
        %v2936 = vpop.f32.mrf.mxu0
        %v2937 = vadd.f32 %v2924, %v2936
        %v2938 = vpop.f32.mrf.mxu0
        %2939 = vdwg.mxu0
        %2940 = vmatpush.bf16.msra.mxu0 %v2301
        %2941 = vmatpush.bf16.msra.mxu0 %v2300
        %2942 = vmatpush.bf16.msra.mxu0 %v2299
        %2943 = vmatpush.bf16.msra.mxu0 %v2298
        %2944 = vmatpush.bf16.msra.mxu0 %v2297
        %2945 = vmatpush.bf16.msra.mxu0 %v2296
        %2946 = vmatpush.bf16.msra.mxu0 %v2295
        %2947 = vmatpush.bf16.msra.mxu0 %v2294
        %2948 = vmatmul.bf16.gmra.mxu0 %v972
        %v2949 = vpop.f32.mrf.mxu0
        %v2950 = vadd.f32 %v2937, %v2949
        %v2951 = vpop.f32.mrf.mxu0
        %2952 = vdwg.mxu0
        %2953 = vmatpush.bf16.msra.mxu0 %v2309
        %2954 = vmatpush.bf16.msra.mxu0 %v2308
        %2955 = vmatpush.bf16.msra.mxu0 %v2307
        %2956 = vmatpush.bf16.msra.mxu0 %v2306
        %2957 = vmatpush.bf16.msra.mxu0 %v2305
        %2958 = vmatpush.bf16.msra.mxu0 %v2304
        %2959 = vmatpush.bf16.msra.mxu0 %v2303
        %2960 = vmatpush.bf16.msra.mxu0 %v2302
        %2961 = vmatmul.bf16.gmra.mxu0 %v973
        %v2962 = vpop.f32.mrf.mxu0
        %v2963 = vadd.f32 %v2950, %v2962
        %v2964 = vpop.f32.mrf.mxu0
        %2965 = vdwg.mxu0
        %2966 = vmatpush.bf16.msra.mxu0 %v2317
        %2967 = vmatpush.bf16.msra.mxu0 %v2316
        %2968 = vmatpush.bf16.msra.mxu0 %v2315
        %2969 = vmatpush.bf16.msra.mxu0 %v2314
        %2970 = vmatpush.bf16.msra.mxu0 %v2313
        %2971 = vmatpush.bf16.msra.mxu0 %v2312
        %2972 = vmatpush.bf16.msra.mxu0 %v2311
        %2973 = vmatpush.bf16.msra.mxu0 %v2310
        %2974 = vmatmul.bf16.gmra.mxu0 %v974
        %v2975 = vpop.f32.mrf.mxu0
        %v2976 = vadd.f32 %v2963, %v2975
        %v2977 = vpop.f32.mrf.mxu0
        %2978 = vdwg.mxu0
        %2979 = vmatpush.bf16.msra.mxu0 %v2325
        %2980 = vmatpush.bf16.msra.mxu0 %v2324
        %2981 = vmatpush.bf16.msra.mxu0 %v2323
        %2982 = vmatpush.bf16.msra.mxu0 %v2322
        %2983 = vmatpush.bf16.msra.mxu0 %v2321
        %2984 = vmatpush.bf16.msra.mxu0 %v2320
        %2985 = vmatpush.bf16.msra.mxu0 %v2319
        %2986 = vmatpush.bf16.msra.mxu0 %v2318
        %2987 = vmatmul.bf16.gmra.mxu0 %v975
        %v2988 = vpop.f32.mrf.mxu0
        %v2989 = vadd.f32 %v2976, %v2988
        %v2990 = vpop.f32.mrf.mxu0
        %2991 = vdwg.mxu0
        %2992 = vmatpush.bf16.msra.mxu0 %v2333
        %2993 = vmatpush.bf16.msra.mxu0 %v2332
        %2994 = vmatpush.bf16.msra.mxu0 %v2331
        %2995 = vmatpush.bf16.msra.mxu0 %v2330
        %2996 = vmatpush.bf16.msra.mxu0 %v2329
        %2997 = vmatpush.bf16.msra.mxu0 %v2328
        %2998 = vmatpush.bf16.msra.mxu0 %v2327
        %2999 = vmatpush.bf16.msra.mxu0 %v2326
        %3000 = vmatmul.bf16.gmra.mxu0 %v976
        %v3001 = vpop.f32.mrf.mxu0
        %v3002 = vadd.f32 %v2989, %v3001
        %v3003 = vpop.f32.mrf.mxu0
        %3004 = vdwg.mxu0
        %3005 = vmatpush.bf16.msra.mxu0 %v2341
        %3006 = vmatpush.bf16.msra.mxu0 %v2340
        %3007 = vmatpush.bf16.msra.mxu0 %v2339
        %3008 = vmatpush.bf16.msra.mxu0 %v2338
        %3009 = vmatpush.bf16.msra.mxu0 %v2337
        %3010 = vmatpush.bf16.msra.mxu0 %v2336
        %3011 = vmatpush.bf16.msra.mxu0 %v2335
        %3012 = vmatpush.bf16.msra.mxu0 %v2334
        %3013 = vmatmul.bf16.gmra.mxu0 %v977
        %v3014 = vpop.f32.mrf.mxu0
        %v3015 = vadd.f32 %v3002, %v3014
        %v3016 = vpop.f32.mrf.mxu0
        %3017 = vdwg.mxu0
        %3018 = vmatpush.bf16.msra.mxu0 %v2349
        %3019 = vmatpush.bf16.msra.mxu0 %v2348
        %3020 = vmatpush.bf16.msra.mxu0 %v2347
        %3021 = vmatpush.bf16.msra.mxu0 %v2346
        %3022 = vmatpush.bf16.msra.mxu0 %v2345
        %3023 = vmatpush.bf16.msra.mxu0 %v2344
        %3024 = vmatpush.bf16.msra.mxu0 %v2343
        %3025 = vmatpush.bf16.msra.mxu0 %v2342
        %3026 = vmatmul.bf16.gmra.mxu0 %v978
        %v3027 = vpop.f32.mrf.mxu0
        %v3028 = vadd.f32 %v3015, %v3027
        %v3029 = vpop.f32.mrf.mxu0
        %3030 = vdwg.mxu0
        %3031 = vmatpush.bf16.msra.mxu0 %v2357
        %3032 = vmatpush.bf16.msra.mxu0 %v2356
        %3033 = vmatpush.bf16.msra.mxu0 %v2355
        %3034 = vmatpush.bf16.msra.mxu0 %v2354
        %3035 = vmatpush.bf16.msra.mxu0 %v2353
        %3036 = vmatpush.bf16.msra.mxu0 %v2352
        %3037 = vmatpush.bf16.msra.mxu0 %v2351
        %3038 = vmatpush.bf16.msra.mxu0 %v2350
        %3039 = vmatmul.bf16.gmra.mxu0 %v979
        %v3040 = vpop.f32.mrf.mxu0
        %v3041 = vadd.f32 %v3028, %v3040
        %v3042 = vpop.f32.mrf.mxu0
        %3043 = vdwg.mxu0
        %3044 = vmatpush.bf16.msra.mxu0 %v2365
        %3045 = vmatpush.bf16.msra.mxu0 %v2364
        %3046 = vmatpush.bf16.msra.mxu0 %v2363
        %3047 = vmatpush.bf16.msra.mxu0 %v2362
        %3048 = vmatpush.bf16.msra.mxu0 %v2361
        %3049 = vmatpush.bf16.msra.mxu0 %v2360
        %3050 = vmatpush.bf16.msra.mxu0 %v2359
        %3051 = vmatpush.bf16.msra.mxu0 %v2358
        %3052 = vmatmul.bf16.gmra.mxu0 %v980
        %v3053 = vpop.f32.mrf.mxu0
        %v3054 = vadd.f32 %v3041, %v3053
        %v3055 = vpop.f32.mrf.mxu0
        %3056 = vdwg.mxu0
        %3057 = vmatpush.bf16.msra.mxu0 %v2373
        %3058 = vmatpush.bf16.msra.mxu0 %v2372
        %3059 = vmatpush.bf16.msra.mxu0 %v2371
        %3060 = vmatpush.bf16.msra.mxu0 %v2370
        %3061 = vmatpush.bf16.msra.mxu0 %v2369
        %3062 = vmatpush.bf16.msra.mxu0 %v2368
        %3063 = vmatpush.bf16.msra.mxu0 %v2367
        %3064 = vmatpush.bf16.msra.mxu0 %v2366
        %3065 = vmatmul.bf16.gmra.mxu0 %v981
        %v3066 = vpop.f32.mrf.mxu0
        %v3067 = vadd.f32 %v3054, %v3066
        %v3068 = vpop.f32.mrf.mxu0
        %3069 = vdwg.mxu0
        %3070 = vmatpush.bf16.msra.mxu0 %v2381
        %3071 = vmatpush.bf16.msra.mxu0 %v2380
        %3072 = vmatpush.bf16.msra.mxu0 %v2379
        %3073 = vmatpush.bf16.msra.mxu0 %v2378
        %3074 = vmatpush.bf16.msra.mxu0 %v2377
        %3075 = vmatpush.bf16.msra.mxu0 %v2376
        %3076 = vmatpush.bf16.msra.mxu0 %v2375
        %3077 = vmatpush.bf16.msra.mxu0 %v2374
        %3078 = vmatmul.bf16.gmra.mxu0 %v982
        %v3079 = vpop.f32.mrf.mxu0
        %v3080 = vadd.f32 %v3067, %v3079
        %v3081 = vpop.f32.mrf.mxu0
        %3082 = vdwg.mxu0
        %3083 = vmatpush.bf16.msra.mxu0 %v2389
        %3084 = vmatpush.bf16.msra.mxu0 %v2388
        %3085 = vmatpush.bf16.msra.mxu0 %v2387
        %3086 = vmatpush.bf16.msra.mxu0 %v2386
        %3087 = vmatpush.bf16.msra.mxu0 %v2385
        %3088 = vmatpush.bf16.msra.mxu0 %v2384
        %3089 = vmatpush.bf16.msra.mxu0 %v2383
        %3090 = vmatpush.bf16.msra.mxu0 %v2382
        %3091 = vmatmul.bf16.gmra.mxu0 %v983
        %v3092 = vpop.f32.mrf.mxu0
        %v3093 = vadd.f32 %v3080, %v3092
        %v3094 = vpop.f32.mrf.mxu0
        %3095 = vdwg.mxu0
        %3096 = vmatpush.bf16.msra.mxu0 %v2397
        %3097 = vmatpush.bf16.msra.mxu0 %v2396
        %3098 = vmatpush.bf16.msra.mxu0 %v2395
        %3099 = vmatpush.bf16.msra.mxu0 %v2394
        %3100 = vmatpush.bf16.msra.mxu0 %v2393
        %3101 = vmatpush.bf16.msra.mxu0 %v2392
        %3102 = vmatpush.bf16.msra.mxu0 %v2391
        %3103 = vmatpush.bf16.msra.mxu0 %v2390
        %3104 = vmatmul.bf16.gmra.mxu0 %v984
        %v3105 = vpop.f32.mrf.mxu0
        %v3106 = vadd.f32 %v3093, %v3105
        %v3107 = vpop.f32.mrf.mxu0
        %3108 = vdwg.mxu0
        %3109 = vmatpush.bf16.msra.mxu0 %v2405
        %3110 = vmatpush.bf16.msra.mxu0 %v2404
        %3111 = vmatpush.bf16.msra.mxu0 %v2403
        %3112 = vmatpush.bf16.msra.mxu0 %v2402
        %3113 = vmatpush.bf16.msra.mxu0 %v2401
        %3114 = vmatpush.bf16.msra.mxu0 %v2400
        %3115 = vmatpush.bf16.msra.mxu0 %v2399
        %3116 = vmatpush.bf16.msra.mxu0 %v2398
        %3117 = vmatmul.bf16.gmra.mxu0 %v985
        %v3118 = vpop.f32.mrf.mxu0
        %v3119 = vadd.f32 %v3106, %v3118
        %v3120 = vpop.f32.mrf.mxu0
        %3121 = vdwg.mxu0
        %3122 = vmatpush.bf16.msra.mxu0 %v2413
        %3123 = vmatpush.bf16.msra.mxu0 %v2412
        %3124 = vmatpush.bf16.msra.mxu0 %v2411
        %3125 = vmatpush.bf16.msra.mxu0 %v2410
        %3126 = vmatpush.bf16.msra.mxu0 %v2409
        %3127 = vmatpush.bf16.msra.mxu0 %v2408
        %3128 = vmatpush.bf16.msra.mxu0 %v2407
        %3129 = vmatpush.bf16.msra.mxu0 %v2406
        %3130 = vmatmul.bf16.gmra.mxu0 %v986
        %v3131 = vpop.f32.mrf.mxu0
        %v3132 = vadd.f32 %v3119, %v3131
        %v3133 = vpop.f32.mrf.mxu0
        %3134 = vdwg.mxu0
        %3135 = vmatpush.bf16.msra.mxu0 %v2421
        %3136 = vmatpush.bf16.msra.mxu0 %v2420
        %3137 = vmatpush.bf16.msra.mxu0 %v2419
        %3138 = vmatpush.bf16.msra.mxu0 %v2418
        %3139 = vmatpush.bf16.msra.mxu0 %v2417
        %3140 = vmatpush.bf16.msra.mxu0 %v2416
        %3141 = vmatpush.bf16.msra.mxu0 %v2415
        %3142 = vmatpush.bf16.msra.mxu0 %v2414
        %3143 = vmatmul.bf16.gmra.mxu0 %v987
        %v3144 = vpop.f32.mrf.mxu0
        %v3145 = vadd.f32 %v3132, %v3144
        %v3146 = vpop.f32.mrf.mxu0
        %3147 = vdwg.mxu0
        %3148 = vmatpush.bf16.msra.mxu0 %v2429
        %3149 = vmatpush.bf16.msra.mxu0 %v2428
        %3150 = vmatpush.bf16.msra.mxu0 %v2427
        %3151 = vmatpush.bf16.msra.mxu0 %v2426
        %3152 = vmatpush.bf16.msra.mxu0 %v2425
        %3153 = vmatpush.bf16.msra.mxu0 %v2424
        %3154 = vmatpush.bf16.msra.mxu0 %v2423
        %3155 = vmatpush.bf16.msra.mxu0 %v2422
        %3156 = vmatmul.bf16.gmra.mxu0 %v988
        %v3157 = vpop.f32.mrf.mxu0
        %v3158 = vadd.f32 %v3145, %v3157
        %v3159 = vpop.f32.mrf.mxu0
        %3160 = vdwg.mxu0
        %3161 = vmatpush.bf16.msra.mxu0 %v2437
        %3162 = vmatpush.bf16.msra.mxu0 %v2436
        %3163 = vmatpush.bf16.msra.mxu0 %v2435
        %3164 = vmatpush.bf16.msra.mxu0 %v2434
        %3165 = vmatpush.bf16.msra.mxu0 %v2433
        %3166 = vmatpush.bf16.msra.mxu0 %v2432
        %3167 = vmatpush.bf16.msra.mxu0 %v2431
        %3168 = vmatpush.bf16.msra.mxu0 %v2430
        %3169 = vmatmul.bf16.gmra.mxu0 %v989
        %v3170 = vpop.f32.mrf.mxu0
        %v3171 = vadd.f32 %v3158, %v3170
        %v3172 = vpop.f32.mrf.mxu0
        %3173 = vdwg.mxu0
        %3174 = vmatpush.bf16.msra.mxu0 %v2445
        %3175 = vmatpush.bf16.msra.mxu0 %v2444
        %3176 = vmatpush.bf16.msra.mxu0 %v2443
        %3177 = vmatpush.bf16.msra.mxu0 %v2442
        %3178 = vmatpush.bf16.msra.mxu0 %v2441
        %3179 = vmatpush.bf16.msra.mxu0 %v2440
        %3180 = vmatpush.bf16.msra.mxu0 %v2439
        %3181 = vmatpush.bf16.msra.mxu0 %v2438
        %3182 = vmatmul.bf16.gmra.mxu0 %v990
        %v3183 = vpop.f32.mrf.mxu0
        %v3184 = vadd.f32 %v3171, %v3183
        %v3185 = vpop.f32.mrf.mxu0
        %3186 = vdwg.mxu0
        %3187 = vmatpush.bf16.msra.mxu0 %v2453
        %3188 = vmatpush.bf16.msra.mxu0 %v2452
        %3189 = vmatpush.bf16.msra.mxu0 %v2451
        %3190 = vmatpush.bf16.msra.mxu0 %v2450
        %3191 = vmatpush.bf16.msra.mxu0 %v2449
        %3192 = vmatpush.bf16.msra.mxu0 %v2448
        %3193 = vmatpush.bf16.msra.mxu0 %v2447
        %3194 = vmatpush.bf16.msra.mxu0 %v2446
        %3195 = vmatmul.bf16.gmra.mxu0 %v991
        %v3196 = vpop.f32.mrf.mxu0
        %v3197 = vadd.f32 %v3184, %v3196
        %v3198 = vpop.f32.mrf.mxu0
        %3199 = vdwg.mxu0
        %3200 = vmatpush.bf16.msra.mxu0 %v2461
        %3201 = vmatpush.bf16.msra.mxu0 %v2460
        %3202 = vmatpush.bf16.msra.mxu0 %v2459
        %3203 = vmatpush.bf16.msra.mxu0 %v2458
        %3204 = vmatpush.bf16.msra.mxu0 %v2457
        %3205 = vmatpush.bf16.msra.mxu0 %v2456
        %3206 = vmatpush.bf16.msra.mxu0 %v2455
        %3207 = vmatpush.bf16.msra.mxu0 %v2454
        %3208 = vmatmul.bf16.gmra.mxu0 %v992
        %v3209 = vpop.f32.mrf.mxu0
        %v3210 = vadd.f32 %v3197, %v3209
        %v3211 = vpop.f32.mrf.mxu0
        %3212 = vdwg.mxu0
        %3213 = vmatpush.bf16.msra.mxu0 %v2469
        %3214 = vmatpush.bf16.msra.mxu0 %v2468
        %3215 = vmatpush.bf16.msra.mxu0 %v2467
        %3216 = vmatpush.bf16.msra.mxu0 %v2466
        %3217 = vmatpush.bf16.msra.mxu0 %v2465
        %3218 = vmatpush.bf16.msra.mxu0 %v2464
        %3219 = vmatpush.bf16.msra.mxu0 %v2463
        %3220 = vmatpush.bf16.msra.mxu0 %v2462
        %3221 = vmatmul.bf16.gmra.mxu0 %v993
        %v3222 = vpop.f32.mrf.mxu0
        %v3223 = vadd.f32 %v3210, %v3222
        %v3224 = vpop.f32.mrf.mxu0
        %3225 = vdwg.mxu0
        %v3226 = vadd.f32 %v309, %v3223
        %3227 = vst [vmem:[#allocation2] sm:$0xff] %v3226
        %p3228 = scmp.eq.s32.totalorder %s24, 1
        // Predicated region
        $region61: #{net_shared_forward.1} parent=39 // pred_check
          %p3229 = pneg %p3228
        $region62: #{net_shared_forward.1} parent=39 // pred_check_branch
          %3231 = sbr.rel (%p3229) target = $region64
        $region63: #{net_shared_forward.1} parent=39 // pred_region
          %v3232 = vld [vmem:[#allocation2] sm:$0xff]
          %v3233 = vld [vmem:[#allocation8] sm:$0x1]
          %v3235 = vperm.slane %v3233, 0
          %v3237 = vadd.f32 %v3232, %v3235
          %v3238 = vmax.f32 %v3237, 0.0
          %v3239 = vld [vmem:[%s3] sm:$0xff]
          %v3240 = vld [vmem:[%s3 + $0x8] sm:$0xff]
          %v3241 = vld [vmem:[%s3 + $0x10] sm:$0xff]
          %v3242 = vld [vmem:[%s3 + $0x18] sm:$0xff]
          %v3243 = vld [vmem:[%s3 + $0x20] sm:$0xff]
          %v3244 = vld [vmem:[%s3 + $0x28] sm:$0xff]
          %v3245 = vld [vmem:[%s3 + $0x30] sm:$0xff]
          %v3246 = vld [vmem:[%s3 + $0x38] sm:$0xff]
          %v3247 = vld [vmem:[%s3 + $0x40] sm:$0xff]
          %v3248 = vld [vmem:[%s3 + $0x48] sm:$0xff]
          %v3249 = vld [vmem:[%s3 + $0x50] sm:$0xff]
          %v3250 = vld [vmem:[%s3 + $0x58] sm:$0xff]
          %v3251 = vld [vmem:[%s3 + $0x60] sm:$0xff]
          %v3252 = vld [vmem:[%s3 + $0x68] sm:$0xff]
          %v3253 = vld [vmem:[%s3 + $0x70] sm:$0xff]
          %v3254 = vld [vmem:[%s3 + $0x78] sm:$0xff]
          %v3255 = vld [vmem:[#allocation9] sm:$0x1]
          %v3257 = vperm.slane %v3255, 0
          %3259 = vmatpush.msra.mxu0 %v3254
          %3260 = vmatpush.msra.mxu0 %v3253
          %3261 = vmatpush.msra.mxu0 %v3252
          %3262 = vmatpush.msra.mxu0 %v3251
          %3263 = vmatpush.msra.mxu0 %v3250
          %3264 = vmatpush.msra.mxu0 %v3249
          %3265 = vmatpush.msra.mxu0 %v3248
          %3266 = vmatpush.msra.mxu0 %v3247
          %3267 = vmatpush.msra.mxu0 %v3246
          %3268 = vmatpush.msra.mxu0 %v3245
          %3269 = vmatpush.msra.mxu0 %v3244
          %3270 = vmatpush.msra.mxu0 %v3243
          %3271 = vmatpush.msra.mxu0 %v3242
          %3272 = vmatpush.msra.mxu0 %v3241
          %3273 = vmatpush.msra.mxu0 %v3240
          %3274 = vmatpush.msra.mxu0 %v3239
          %3275 = vmatmul.f32.gmra.mxu0 %v3238
          %v3276 = vpop.f32.mrf.mxu0
          %v3277 = vadd.f32 %v3257, %v3276
          %3278 = vdwg.mxu0
          %vm3279 = vcmask 80896
          %v3280 = vsel %vm3279, %v3277, -inf
          %3281 = vmax.xlane.f32.xlu0 %v3280
          %v3282 = vpop.xlane.xlu0 %3281
          %v3283 = vsub.f32 %v3277, %v3282
          %v3284 = vmul.f32 %v3283, 1.442695
          %v3285 = vpow.pop %v3284
          %v3286 = vsel %vm3279, %v3285, 0.0
          %3287 = vadd.xlane.f32.xlu0 %v3286
          %v3288 = vpop.xlane.xlu0 %3287
          %v3289 = vlog2.pop %v3288
          %v3290 = vmul.f32 %v3289, 0.6931472
          %v3291 = vsub.f32 %v3283, %v3290
          %3292 = vst.msk [vmem:[#allocation11] sm:$0xff] %vm3279, %v3291
        $region64: #{net_shared_forward.1} parent=39 // pred_fallthru
          _
        // Predicated region
        $region65: #{net_shared_forward.1} parent=39 // pred_check
          %p3293 = pneg %p152
        $region66: #{net_shared_forward.1} parent=39 // pred_check_branch
          %3295 = sbr.rel (%p3293) target = $region68
        $region67: #{net_shared_forward.1} parent=39 // pred_region
          %3297 = vsyncadd [#allocation5], 0
          %s3299 = sshll.u32 [#allocation11], 4
          %s3300 = int_to_ptr.vmem [resolvable:$true] %s3299
          %s3301 = sshll.u32 %s5, 4
          %s3302 = int_to_ptr.hbm [resolvable:$true] %s3301
          %3304 = dma.vmem_to_hbm [thread:$0]  %s3300, 128, %s3302, [#allocation5]
        $region68: #{net_shared_forward.1} parent=39 // pred_fallthru
          _
        // Predicated region
        $region69: #{net_shared_forward.1} parent=39 // pred_check
          %p3305 = pneg %p152
        $region70: #{net_shared_forward.1} parent=39 // pred_check_branch
          %3307 = sbr.rel (%p3305) target = $region72
        $region71: #{net_shared_forward.1} parent=39 // pred_region
          %3309 = dma.done [#allocation5], 128
        $region72: #{net_shared_forward.1} parent=39 // pred_fallthru
          _
      $region40: #{net_shared_forward.1} parent=5 // pred_fallthru
        _
      %p3310 = scmp.le.s32.totalorder 2, %s19
      // Predicated region
      $region73: #{net_shared_forward.1} parent=5 // pred_check
        %p3311 = pneg %p3310
      $region74: #{net_shared_forward.1} parent=5 // pred_check_branch
        %3313 = sbr.rel (%p3311) target = $region76
      $region75: #{net_shared_forward.1} parent=5 // pred_region
        %s3314 = ssub.s32 %s19, 2
      $region76: #{net_shared_forward.1} parent=5 // pred_fallthru
        _
    $region6: #{net_shared_forward.1} parent=1 // loop_footer
      %s23 = sadd.s32 1, %s19
    $region7: #{net_shared_forward.1} parent=1 // loop_footer_branch
      %18 = sbr.rel target = $region3
    $region8: #{net_shared_forward.1} parent=1 // loop_exit
      _
    %3315 = vsyncpa [#allocation4], 1
    %s3316 = scalar_lea.sflag [#allocation4], 1
    %3317 = vsyncpa %s3316, 1
    %3318 = vsyncpa [#allocation7], 1
    %s3319 = scalar_lea.sflag [#allocation7], 1
    %3320 = vsyncpa %s3319, 1
    %3321 = vsyncpa [#allocation10], 1
    %3322 = vsyncpa [#allocation5], 1
    %s3323 = scalar_lea.sflag [#allocation5], 1
    %3324 = vsyncpa %s3323, 1

</llo_original>
